<compile_context>
chip_gen: v6e
topology: v6e:2x2x1
jax: 0.10.0
libtpu: 0.0.40
codegen_flags: <defaults>
</compile_context>

<pallas_src>
import functools

import jax
import jax.numpy as jnp
import numpy as np
from jax.experimental import pallas as pl
from jax.experimental.pallas import tpu as pltpu


def _round_up(v, m):
    return (v + m - 1) // m * m


def gin_layer_kernel(x_resident, eps_ref, adj_ref, *refs):
    if x_resident:
        (x_ref, w0_ref, b0_ref, w1_ref, bh_ref, nnorm_ref, o_ref) = refs
    else:
        (xk_ref, xr_ref, w0_ref, b0_ref, w1_ref, bh_ref, nnorm_ref, o_ref) = refs

    i = pl.program_id(0)
    k = pl.program_id(1)
    tile_n, tile_k = adj_ref.shape

    def row_tile():
        if x_resident:
            r0 = pl.multiple_of(i * tile_n, tile_n)
            return x_ref[pl.ds(r0, tile_n), :]
        return xr_ref[...]

    def k_tile():
        if x_resident:
            c0 = pl.multiple_of(k * tile_k, tile_k)
            return x_ref[pl.ds(c0, tile_k), :]
        return xk_ref[...]

    @pl.when(k == 0)
    def _():
        # y starts as eps * x for this row tile; adj@x accumulates on top (f32 output block).
        o_ref[...] = eps_ref[0] * row_tile()

    # y += adj[i-tile, k-tile] @ x[k-tile, :]
    # adj bf16 x (x cast to adj dtype) -> full-rate MXU matmul, f32 accumulate.
    # (adj_dtype=f32 gives the exact, slower emulated-f32 path for weighted adjacency.)
    o_ref[...] += jnp.dot(adj_ref[...], k_tile().astype(adj_ref.dtype),
                          preferred_element_type=jnp.float32)

    @pl.when(k == pl.num_programs(1) - 1)
    def _():
        y = o_ref[...]
        # GINMLP layer 0: Linear(no bias) with eval BN0 scale folded into W0, + shift, ReLU.
        h = jnp.maximum(
            jnp.dot(y, w0_ref[...], preferred_element_type=jnp.float32) + b0_ref[...],
            0.0)
        # GINMLP layer 1 (BNh scale folded into W1), graph_norm, BNh shift, ReLU, residual.
        z = jnp.dot(h, w1_ref[...], preferred_element_type=jnp.float32)
        z = z * nnorm_ref[...] + bh_ref[...]
        z = jnp.maximum(z, 0.0)
        o_ref[...] = z + row_tile()          # residue (dropout = identity in eval)


def graph_isomorphism_layer(x, adj, n_norm, params, *, adj_dtype=jnp.bfloat16):
    N, D = x.shape
    bn_eps = 1e-5

    # ---- tiling: lane-dense feature dim; row/K tiles >=128, up to 512 ----
    d_pad = _round_up(D, 128)
    n_pad = _round_up(N, 128)                 # lane-dense adj blocks even for tiny graphs
    if n_pad <= 512:
        tile = n_pad                          # whole graph in a single tile
    else:
        tile = next(t for t in (512, 384, 256, 128) if n_pad % t == 0)
    tile_n = tile_k = tile
    n_row = n_pad // tile_n
    n_k = n_pad // tile_k

    # Hold x fully resident in VMEM when it is small (removes the per-row-tile re-stream).
    x_bytes = n_pad * d_pad * 4
    x_resident = x_bytes <= (16 << 20)

    # ---- fold eval-mode BatchNorm into the linear weights + per-feature shift ----
    bn0_scale = params["bn0_gamma"] / jnp.sqrt(params["bn0_var"] + bn_eps)
    bn0_shift = params["bn0_beta"] - params["bn0_mean"] * bn0_scale
    bnh_scale = params["bnh_gamma"] / jnp.sqrt(params["bnh_var"] + bn_eps)
    bnh_shift = params["bnh_beta"] - params["bnh_mean"] * bnh_scale
    w0s = params["w0"].T * bn0_scale[None, :]      # (D, D), columns scaled by BN0
    w1s = params["w1"].T * bnh_scale[None, :]      # (D, D), columns scaled by BNh

    # ---- zero-pad to TPU-friendly shapes (adj cast BEFORE padding: no padded f32 copy) ----
    xp = jnp.zeros((n_pad, d_pad), jnp.float32).at[:N, :D].set(x)
    adjp = jnp.zeros((n_pad, n_pad), adj_dtype).at[:N, :N].set(adj.astype(adj_dtype))
    nnp = jnp.zeros((n_pad, 1), jnp.float32).at[:N, :].set(n_norm)
    w0p = jnp.zeros((d_pad, d_pad), jnp.float32).at[:D, :D].set(w0s)
    w1p = jnp.zeros((d_pad, d_pad), jnp.float32).at[:D, :D].set(w1s)
    b0p = jnp.zeros((1, d_pad), jnp.float32).at[0, :D].set(bn0_shift)
    bhp = jnp.zeros((1, d_pad), jnp.float32).at[0, :D].set(bnh_shift)
    eps = params["weight"].astype(jnp.float32)     # (1,) scalar parameter

    adj_isz = jnp.dtype(adj_dtype).itemsize

    def _run(single_buffer_consts):
        const_kw = {"pipeline_mode": pl.Buffered(1)} if single_buffer_consts else {}
        const_bufs = 1 if single_buffer_consts else 2

        in_specs = [
            pl.BlockSpec(memory_space=pltpu.MemorySpace.SMEM),             # eps scalar
            pl.BlockSpec((tile_n, tile_k), lambda i, k: (i, k)),           # adj tile (narrow stream)
        ]
        args = [eps, adjp]
        vmem = 2 * tile_n * tile_k * adj_isz                               # adj double-buffered
        if x_resident:
            in_specs.append(
                pl.BlockSpec((n_pad, d_pad), lambda i, k: (0, 0), **const_kw))   # resident x
            args.append(xp)
            vmem += const_bufs * n_pad * d_pad * 4
        else:
            in_specs += [
                pl.BlockSpec((tile_k, d_pad), lambda i, k: (k, 0)),        # x K-tile (contraction)
                pl.BlockSpec((tile_n, d_pad), lambda i, k: (i, 0)),        # x row-tile (eps/residual)
            ]
            args += [xp, xp]
            vmem += 2 * (tile_k + tile_n) * d_pad * 4
        in_specs += [
            pl.BlockSpec((d_pad, d_pad), lambda i, k: (0, 0), **const_kw),  # W0^T * bn0_scale
            pl.BlockSpec((1, d_pad), lambda i, k: (0, 0), **const_kw),      # bn0 shift
            pl.BlockSpec((d_pad, d_pad), lambda i, k: (0, 0), **const_kw),  # W1^T * bnh_scale
            pl.BlockSpec((1, d_pad), lambda i, k: (0, 0), **const_kw),      # bnh shift
            pl.BlockSpec((tile_n, 1), lambda i, k: (i, 0)),                 # n_norm row-tile
        ]
        args += [w0p, b0p, w1p, bhp, nnp]
        vmem += const_bufs * (2 * d_pad * d_pad + 2 * d_pad) * 4            # weights + shifts
        vmem += 2 * tile_n * 128 * 4                                        # n_norm (lane-padded)
        vmem += 2 * tile_n * d_pad * 4                                      # output block
        # Explicit scoped-VMEM budget from the actual buffers (+ headroom), modest cap.
        vmem_limit = int(min(max(vmem + (8 << 20), 32 << 20), 96 << 20))

        out = pl.pallas_call(
            functools.partial(gin_layer_kernel, x_resident),
            out_shape=jax.ShapeDtypeStruct((n_pad, d_pad), jnp.float32),
            grid_spec=pltpu.PrefetchScalarGridSpec(
                num_scalar_prefetch=0,
                grid=(n_row, n_k),                                          # K innermost
                in_specs=in_specs,
                out_specs=pl.BlockSpec((tile_n, d_pad), lambda i, k: (i, 0)),
            ),
            compiler_params=pltpu.CompilerParams(
                dimension_semantics=("parallel", "arbitrary"),
                vmem_limit_bytes=vmem_limit),
        )(*args)
        return jax.block_until_ready(out)

    try:
        out = _run(True)
    except Exception:
        # Fallback if pl.Buffered(1) single-buffering is rejected on this jax/libtpu combo.
        out = _run(False)

    return out[:N, :D]


def reference_jax(x, adj, n_norm, params):
    bn_eps = 1e-5
    y = adj @ x
    y = y + params["weight"][0] * x
    h = y @ params["w0"].T
    h = (h - params["bn0_mean"]) / jnp.sqrt(params["bn0_var"] + bn_eps)
    h = jnp.maximum(h * params["bn0_gamma"] + params["bn0_beta"], 0.0)
    y = h @ params["w1"].T
    y = y * n_norm
    y = (y - params["bnh_mean"]) / jnp.sqrt(params["bnh_var"] + bn_eps)
    y = y * params["bnh_gamma"] + params["bnh_beta"]
    y = jnp.maximum(y, 0.0)
    return y + x


if __name__ == "__main__":
    # Small shapes: N=16 nodes, in_dim = out_dim = 32 (residue active).
    N, D = 16, 32
    key = jax.random.PRNGKey(0)
    k_x, k_adj, k_nn, k_w0, k_w1 = jax.random.split(key, 5)

    x = jax.random.normal(k_x, (N, D), dtype=jnp.float32)
    adj = (jax.random.uniform(k_adj, (N, N)) < 0.3).astype(jnp.float32)
    n_norm = jax.random.uniform(k_nn, (N, 1), minval=0.1, maxval=1.0, dtype=jnp.float32)

    bound0 = 1.0 / np.sqrt(D)
    params = {
        "weight": jnp.array([0.0], dtype=jnp.float32),  # nn.Parameter init in __init__
        "w0": jax.random.uniform(k_w0, (D, D), minval=-bound0, maxval=bound0,
                                 dtype=jnp.float32),
        "w1": jax.random.uniform(k_w1, (D, D), minval=-bound0, maxval=bound0,
                                 dtype=jnp.float32),
        # BatchNorm1d default params / running stats (eval mode).
        "bn0_gamma": jnp.ones((D,), jnp.float32),
        "bn0_beta": jnp.zeros((D,), jnp.float32),
        "bn0_mean": jnp.zeros((D,), jnp.float32),
        "bn0_var": jnp.ones((D,), jnp.float32),
        "bnh_gamma": jnp.ones((D,), jnp.float32),
        "bnh_beta": jnp.zeros((D,), jnp.float32),
        "bnh_mean": jnp.zeros((D,), jnp.float32),
        "bnh_var": jnp.ones((D,), jnp.float32),
    }

    ref = reference_jax(x, adj, n_norm, params)

    # Exact path: f32 adjacency contraction -> strict tolerance.
    out_exact = graph_isomorphism_layer(x, adj, n_norm, params, adj_dtype=jnp.float32)
    out_exact = jax.block_until_ready(out_exact)
    np.testing.assert_allclose(np.asarray(out_exact), np.asarray(ref), rtol=1e-5, atol=1e-5)

    # Default fast path: bf16 adj x bf16 x on the MXU with f32 accumulation
    # (deliberate ~1e-3 relative-precision tradeoff on neighbor sums).
    out_fast = graph_isomorphism_layer(x, adj, n_norm, params)
    out_fast = jax.block_until_ready(out_fast)
    np.testing.assert_allclose(np.asarray(out_fast), np.asarray(ref), rtol=2e-2, atol=2e-2)

    print("KERNEL_OK")
</pallas_src>

<mosaic_0001>
module attributes {stable_mosaic.version = 11 : i64} {
  func.func @gin_layer_kernel(%arg0: i32, %arg1: i32, %arg2: memref<1xf32, #tpu.memory_space<smem>>, %arg3: memref<128x128xf32, #tpu.memory_space<vmem>>, %arg4: memref<128x128xf32, #tpu.memory_space<vmem>>, %arg5: memref<128x128xf32, #tpu.memory_space<vmem>>, %arg6: memref<1x128xf32, #tpu.memory_space<vmem>>, %arg7: memref<128x128xf32, #tpu.memory_space<vmem>>, %arg8: memref<1x128xf32, #tpu.memory_space<vmem>>, %arg9: memref<128x1xf32, #tpu.memory_space<vmem>>, %arg10: memref<128x128xf32, #tpu.memory_space<vmem>>) attributes {dimension_semantics = [#tpu.dimension_semantics<parallel>, #tpu.dimension_semantics<arbitrary>], iteration_bounds = array<i64: 1, 1>, scalar_prefetch = 0 : i64, scratch_operands = 0 : i64, tpu.core_type = #tpu.core_type<tc>, window_params = [{transform_indices = @transform_0, window_bounds = array<i64: 1>}, {transform_indices = @transform_1, window_bounds = array<i64: 128, 128>}, {pipeline_mode = #tpu.pipeline_mode<synchronous>, transform_indices = @transform_2, window_bounds = array<i64: 128, 128>}, {pipeline_mode = #tpu.pipeline_mode<synchronous>, transform_indices = @transform_3, window_bounds = array<i64: 128, 128>}, {pipeline_mode = #tpu.pipeline_mode<synchronous>, transform_indices = @transform_4, window_bounds = array<i64: 1, 128>}, {pipeline_mode = #tpu.pipeline_mode<synchronous>, transform_indices = @transform_5, window_bounds = array<i64: 128, 128>}, {pipeline_mode = #tpu.pipeline_mode<synchronous>, transform_indices = @transform_6, window_bounds = array<i64: 1, 128>}, {transform_indices = @transform_7, window_bounds = array<i64: 128, 1>}, {transform_indices = @transform_8, window_bounds = array<i64: 128, 128>}]} {
    %c0_i32 = arith.constant 0 : i32
    %0 = arith.cmpi eq, %arg1, %c0_i32 : i32
    %1 = arith.extui %0 : i1 to i32
    %c0_i32_0 = arith.constant 0 : i32
    %2 = arith.cmpi ne, %1, %c0_i32_0 : i32
    scf.if %2 {
      %c0_9 = arith.constant 0 : index
      %15 = memref.load %arg2[%c0_9] : memref<1xf32, #tpu.memory_space<smem>>
      %c128_i32_10 = arith.constant 128 : i32
      %16 = arith.muli %arg0, %c128_i32_10 : i32
      %17 = tpu.assume_multiple %16, 128 : i32
      %18 = arith.index_cast %17 : i32 to index
      %c0_11 = arith.constant 0 : index
      %19 = vector.load %arg4[%18, %c0_11] : memref<128x128xf32, #tpu.memory_space<vmem>>, vector<128x128xf32>
      %20 = vector.broadcast %15 : f32 to vector<128x128xf32>
      %21 = arith.mulf %20, %19 : vector<128x128xf32>
      %c0_12 = arith.constant 0 : index
      %c0_13 = arith.constant 0 : index
      %22 = vector.load %arg10[%c0_12, %c0_13] : memref<128x128xf32, #tpu.memory_space<vmem>>, vector<128x128xf32>
      tpu.vector_store %arg10[%c0_12, %c0_13], %21 {strides = array<i32>} : memref<128x128xf32, #tpu.memory_space<vmem>>, vector<128x128xf32>,
    } else {
    }
    %c0 = arith.constant 0 : index
    %c0_1 = arith.constant 0 : index
    %3 = vector.load %arg10[%c0, %c0_1] : memref<128x128xf32, #tpu.memory_space<vmem>>, vector<128x128xf32>
    %c0_2 = arith.constant 0 : index
    %c0_3 = arith.constant 0 : index
    %4 = vector.load %arg3[%c0_2, %c0_3] : memref<128x128xf32, #tpu.memory_space<vmem>>, vector<128x128xf32>
    %c128_i32 = arith.constant 128 : i32
    %5 = arith.muli %arg1, %c128_i32 : i32
    %6 = tpu.assume_multiple %5, 128 : i32
    %7 = arith.index_cast %6 : i32 to index
    %c0_4 = arith.constant 0 : index
    %8 = vector.load %arg4[%7, %c0_4] : memref<128x128xf32, #tpu.memory_space<vmem>>, vector<128x128xf32>
    %cst = arith.constant dense<0.000000e+00> : vector<128x128xf32>
    %9 = tpu.matmul %4, %8, %cst {dimension_numbers = #tpu.dot_dimension_numbers<[1], [0], [0], [1], [0, 0, 1, 1], [], []>} : vector<128x128xf32>, vector<128x128xf32>, vector<128x128xf32> -> vector<128x128xf32>
    %10 = arith.addf %3, %9 : vector<128x128xf32>
    %c0_5 = arith.constant 0 : index
    %c0_6 = arith.constant 0 : index
    %11 = vector.load %arg10[%c0_5, %c0_6] : memref<128x128xf32, #tpu.memory_space<vmem>>, vector<128x128xf32>
    tpu.vector_store %arg10[%c0_5, %c0_6], %10 {strides = array<i32>} : memref<128x128xf32, #tpu.memory_space<vmem>>, vector<128x128xf32>,
    %c0_i32_7 = arith.constant 0 : i32
    %12 = arith.cmpi eq, %arg1, %c0_i32_7 : i32
    %13 = arith.extui %12 : i1 to i32
    %c0_i32_8 = arith.constant 0 : i32
    %14 = arith.cmpi ne, %13, %c0_i32_8 : i32
    scf.if %14 {
      %c0_9 = arith.constant 0 : index
      %c0_10 = arith.constant 0 : index
      %15 = vector.load %arg10[%c0_9, %c0_10] : memref<128x128xf32, #tpu.memory_space<vmem>>, vector<128x128xf32>
      %c0_11 = arith.constant 0 : index
      %c0_12 = arith.constant 0 : index
      %16 = vector.load %arg5[%c0_11, %c0_12] : memref<128x128xf32, #tpu.memory_space<vmem>>, vector<128x128xf32>
      %cst_13 = arith.constant dense<0.000000e+00> : vector<128x128xf32>
      %17 = tpu.matmul %15, %16, %cst_13 {dimension_numbers = #tpu.dot_dimension_numbers<[1], [0], [0], [1], [0, 0, 1, 1], [], []>} : vector<128x128xf32>, vector<128x128xf32>, vector<128x128xf32> -> vector<128x128xf32>
      %c0_14 = arith.constant 0 : index
      %c0_15 = arith.constant 0 : index
      %18 = vector.load %arg6[%c0_14, %c0_15] : memref<1x128xf32, #tpu.memory_space<vmem>>, vector<1x128xf32>
      %19 = vector.broadcast %18 : vector<1x128xf32> to vector<128x128xf32>
      %20 = arith.addf %17, %19 : vector<128x128xf32>
      %cst_16 = arith.constant 0.000000e+00 : f32
      %21 = vector.broadcast %cst_16 : f32 to vector<128x128xf32>
      %22 = arith.maximumf %20, %21 : vector<128x128xf32>
      %c0_17 = arith.constant 0 : index
      %c0_18 = arith.constant 0 : index
      %23 = vector.load %arg7[%c0_17, %c0_18] : memref<128x128xf32, #tpu.memory_space<vmem>>, vector<128x128xf32>
      %cst_19 = arith.constant dense<0.000000e+00> : vector<128x128xf32>
      %24 = tpu.matmul %22, %23, %cst_19 {dimension_numbers = #tpu.dot_dimension_numbers<[1], [0], [0], [1], [0, 0, 1, 1], [], []>} : vector<128x128xf32>, vector<128x128xf32>, vector<128x128xf32> -> vector<128x128xf32>
      %c0_20 = arith.constant 0 : index
      %c0_21 = arith.constant 0 : index
      %25 = vector.load %arg9[%c0_20, %c0_21] : memref<128x1xf32, #tpu.memory_space<vmem>>, vector<128x1xf32>
      %26 = vector.broadcast %25 : vector<128x1xf32> to vector<128x128xf32>
      %27 = arith.mulf %24, %26 : vector<128x128xf32>
      %c0_22 = arith.constant 0 : index
      %c0_23 = arith.constant 0 : index
      %28 = vector.load %arg8[%c0_22, %c0_23] : memref<1x128xf32, #tpu.memory_space<vmem>>, vector<1x128xf32>
      %29 = vector.broadcast %28 : vector<1x128xf32> to vector<128x128xf32>
      %30 = arith.addf %27, %29 : vector<128x128xf32>
      %cst_24 = arith.constant 0.000000e+00 : f32
      %31 = vector.broadcast %cst_24 : f32 to vector<128x128xf32>
      %32 = arith.maximumf %30, %31 : vector<128x128xf32>
      %c128_i32_25 = arith.constant 128 : i32
      %33 = arith.muli %arg0, %c128_i32_25 : i32
      %34 = tpu.assume_multiple %33, 128 : i32
      %35 = arith.index_cast %34 : i32 to index
      %c0_26 = arith.constant 0 : index
      %36 = vector.load %arg4[%35, %c0_26] : memref<128x128xf32, #tpu.memory_space<vmem>>, vector<128x128xf32>
      %37 = arith.addf %32, %36 : vector<128x128xf32>
      %c0_27 = arith.constant 0 : index
      %c0_28 = arith.constant 0 : index
      %38 = vector.load %arg10[%c0_27, %c0_28] : memref<128x128xf32, #tpu.memory_space<vmem>>, vector<128x128xf32>
      tpu.vector_store %arg10[%c0_27, %c0_28], %37 {strides = array<i32>} : memref<128x128xf32, #tpu.memory_space<vmem>>, vector<128x128xf32>,
    } else {
    }
    return
  }
  func.func @transform_0(%arg0: i32, %arg1: i32) -> i32 {
    %c0_i32 = arith.constant 0 : i32
    %c0_i32_0 = arith.constant 0 : i32
    return %c0_i32 : i32
  }
  func.func @transform_1(%arg0: i32, %arg1: i32) -> (i32, i32) {
    %c0_i32 = arith.constant 0 : i32
    return %arg0, %arg1 : i32, i32
  }
  func.func @transform_2(%arg0: i32, %arg1: i32) -> (i32, i32) {
    %c0_i32 = arith.constant 0 : i32
    %c0_i32_0 = arith.constant 0 : i32
    %c0_i32_1 = arith.constant 0 : i32
    return %c0_i32, %c0_i32_0 : i32, i32
  }
  func.func @transform_3(%arg0: i32, %arg1: i32) -> (i32, i32) {
    %c0_i32 = arith.constant 0 : i32
    %c0_i32_0 = arith.constant 0 : i32
    %c0_i32_1 = arith.constant 0 : i32
    return %c0_i32, %c0_i32_0 : i32, i32
  }
  func.func @transform_4(%arg0: i32, %arg1: i32) -> (i32, i32) {
    %c0_i32 = arith.constant 0 : i32
    %c0_i32_0 = arith.constant 0 : i32
    %c0_i32_1 = arith.constant 0 : i32
    return %c0_i32, %c0_i32_0 : i32, i32
  }
  func.func @transform_5(%arg0: i32, %arg1: i32) -> (i32, i32) {
    %c0_i32 = arith.constant 0 : i32
    %c0_i32_0 = arith.constant 0 : i32
    %c0_i32_1 = arith.constant 0 : i32
    return %c0_i32, %c0_i32_0 : i32, i32
  }
  func.func @transform_6(%arg0: i32, %arg1: i32) -> (i32, i32) {
    %c0_i32 = arith.constant 0 : i32
    %c0_i32_0 = arith.constant 0 : i32
    %c0_i32_1 = arith.constant 0 : i32
    return %c0_i32, %c0_i32_0 : i32, i32
  }
  func.func @transform_7(%arg0: i32, %arg1: i32) -> (i32, i32) {
    %c0_i32 = arith.constant 0 : i32
    %c0_i32_0 = arith.constant 0 : i32
    return %arg0, %c0_i32 : i32, i32
  }
  func.func @transform_8(%arg0: i32, %arg1: i32) -> (i32, i32) {
    %c0_i32 = arith.constant 0 : i32
    %c0_i32_0 = arith.constant 0 : i32
    return %arg0, %c0_i32 : i32, i32
  }
}

module attributes {stable_mosaic.version = 11 : i64} {
  func.func @gin_layer_kernel(%arg0: i32, %arg1: i32, %arg2: memref<1xf32, #tpu.memory_space<smem>>, %arg3: memref<128x128xf32, #tpu.memory_space<vmem>>, %arg4: memref<128x128xf32, #tpu.memory_space<vmem>>, %arg5: memref<128x128xf32, #tpu.memory_space<vmem>>, %arg6: memref<1x128xf32, #tpu.memory_space<vmem>>, %arg7: memref<128x128xf32, #tpu.memory_space<vmem>>, %arg8: memref<1x128xf32, #tpu.memory_space<vmem>>, %arg9: memref<128x1xf32, #tpu.memory_space<vmem>>, %arg10: memref<128x128xf32, #tpu.memory_space<vmem>>) attributes {dimension_semantics = [#tpu.dimension_semantics<parallel>, #tpu.dimension_semantics<arbitrary>], iteration_bounds = array<i64: 1, 1>, scalar_prefetch = 0 : i64, scratch_operands = 0 : i64, tpu.core_type = #tpu.core_type<tc>, window_params = [{transform_indices = @transform_0, window_bounds = array<i64: 1>}, {transform_indices = @transform_1, window_bounds = array<i64: 128, 128>}, {pipeline_mode = #tpu.pipeline_mode<synchronous>, transform_indices = @transform_2, window_bounds = array<i64: 128, 128>}, {pipeline_mode = #tpu.pipeline_mode<synchronous>, transform_indices = @transform_3, window_bounds = array<i64: 128, 128>}, {pipeline_mode = #tpu.pipeline_mode<synchronous>, transform_indices = @transform_4, window_bounds = array<i64: 1, 128>}, {pipeline_mode = #tpu.pipeline_mode<synchronous>, transform_indices = @transform_5, window_bounds = array<i64: 128, 128>}, {pipeline_mode = #tpu.pipeline_mode<synchronous>, transform_indices = @transform_6, window_bounds = array<i64: 1, 128>}, {transform_indices = @transform_7, window_bounds = array<i64: 128, 1>}, {transform_indices = @transform_8, window_bounds = array<i64: 128, 128>}]} {
    %c0_i32 = arith.constant 0 : i32
    %0 = arith.cmpi eq, %arg1, %c0_i32 : i32
    %1 = arith.extui %0 : i1 to i32
    %c0_i32_0 = arith.constant 0 : i32
    %2 = arith.cmpi ne, %1, %c0_i32_0 : i32
    scf.if %2 {
      %c0_9 = arith.constant 0 : index
      %15 = memref.load %arg2[%c0_9] : memref<1xf32, #tpu.memory_space<smem>>
      %c128_i32_10 = arith.constant 128 : i32
      %16 = arith.muli %arg0, %c128_i32_10 : i32
      %17 = tpu.assume_multiple %16, 128 : i32
      %18 = arith.index_cast %17 : i32 to index
      %c0_11 = arith.constant 0 : index
      %19 = vector.load %arg4[%18, %c0_11] : memref<128x128xf32, #tpu.memory_space<vmem>>, vector<128x128xf32>
      %20 = vector.broadcast %15 : f32 to vector<128x128xf32>
      %21 = arith.mulf %20, %19 : vector<128x128xf32>
      %c0_12 = arith.constant 0 : index
      %c0_13 = arith.constant 0 : index
      %22 = vector.load %arg10[%c0_12, %c0_13] : memref<128x128xf32, #tpu.memory_space<vmem>>, vector<128x128xf32>
      tpu.vector_store %arg10[%c0_12, %c0_13], %21 {strides = array<i32>} : memref<128x128xf32, #tpu.memory_space<vmem>>, vector<128x128xf32>,
    } else {
    }
    %c0 = arith.constant 0 : index
    %c0_1 = arith.constant 0 : index
    %3 = vector.load %arg10[%c0, %c0_1] : memref<128x128xf32, #tpu.memory_space<vmem>>, vector<128x128xf32>
    %c0_2 = arith.constant 0 : index
    %c0_3 = arith.constant 0 : index
    %4 = vector.load %arg3[%c0_2, %c0_3] : memref<128x128xf32, #tpu.memory_space<vmem>>, vector<128x128xf32>
    %c128_i32 = arith.constant 128 : i32
    %5 = arith.muli %arg1, %c128_i32 : i32
    %6 = tpu.assume_multiple %5, 128 : i32
    %7 = arith.index_cast %6 : i32 to index
    %c0_4 = arith.constant 0 : index
    %8 = vector.load %arg4[%7, %c0_4] : memref<128x128xf32, #tpu.memory_space<vmem>>, vector<128x128xf32>
    %cst = arith.constant dense<0.000000e+00> : vector<128x128xf32>
    %9 = tpu.matmul %4, %8, %cst {dimension_numbers = #tpu.dot_dimension_numbers<[1], [0], [0], [1], [0, 0, 1, 1], [], []>} : vector<128x128xf32>, vector<128x128xf32>, vector<128x128xf32> -> vector<128x128xf32>
    %10 = arith.addf %3, %9 : vector<128x128xf32>
    %c0_5 = arith.constant 0 : index
    %c0_6 = arith.constant 0 : index
    %11 = vector.load %arg10[%c0_5, %c0_6] : memref<128x128xf32, #tpu.memory_space<vmem>>, vector<128x128xf32>
    tpu.vector_store %arg10[%c0_5, %c0_6], %10 {strides = array<i32>} : memref<128x128xf32, #tpu.memory_space<vmem>>, vector<128x128xf32>,
    %c0_i32_7 = arith.constant 0 : i32
    %12 = arith.cmpi eq, %arg1, %c0_i32_7 : i32
    %13 = arith.extui %12 : i1 to i32
    %c0_i32_8 = arith.constant 0 : i32
    %14 = arith.cmpi ne, %13, %c0_i32_8 : i32
    scf.if %14 {
      %c0_9 = arith.constant 0 : index
      %c0_10 = arith.constant 0 : index
      %15 = vector.load %arg10[%c0_9, %c0_10] : memref<128x128xf32, #tpu.memory_space<vmem>>, vector<128x128xf32>
      %c0_11 = arith.constant 0 : index
      %c0_12 = arith.constant 0 : index
      %16 = vector.load %arg5[%c0_11, %c0_12] : memref<128x128xf32, #tpu.memory_space<vmem>>, vector<128x128xf32>
      %cst_13 = arith.constant dense<0.000000e+00> : vector<128x128xf32>
      %17 = tpu.matmul %15, %16, %cst_13 {dimension_numbers = #tpu.dot_dimension_numbers<[1], [0], [0], [1], [0, 0, 1, 1], [], []>} : vector<128x128xf32>, vector<128x128xf32>, vector<128x128xf32> -> vector<128x128xf32>
      %c0_14 = arith.constant 0 : index
      %c0_15 = arith.constant 0 : index
      %18 = vector.load %arg6[%c0_14, %c0_15] : memref<1x128xf32, #tpu.memory_space<vmem>>, vector<1x128xf32>
      %19 = vector.broadcast %18 : vector<1x128xf32> to vector<128x128xf32>
      %20 = arith.addf %17, %19 : vector<128x128xf32>
      %cst_16 = arith.constant 0.000000e+00 : f32
      %21 = vector.broadcast %cst_16 : f32 to vector<128x128xf32>
      %22 = arith.maximumf %20, %21 : vector<128x128xf32>
      %c0_17 = arith.constant 0 : index
      %c0_18 = arith.constant 0 : index
      %23 = vector.load %arg7[%c0_17, %c0_18] : memref<128x128xf32, #tpu.memory_space<vmem>>, vector<128x128xf32>
      %cst_19 = arith.constant dense<0.000000e+00> : vector<128x128xf32>
      %24 = tpu.matmul %22, %23, %cst_19 {dimension_numbers = #tpu.dot_dimension_numbers<[1], [0], [0], [1], [0, 0, 1, 1], [], []>} : vector<128x128xf32>, vector<128x128xf32>, vector<128x128xf32> -> vector<128x128xf32>
      %c0_20 = arith.constant 0 : index
      %c0_21 = arith.constant 0 : index
      %25 = vector.load %arg9[%c0_20, %c0_21] : memref<128x1xf32, #tpu.memory_space<vmem>>, vector<128x1xf32>
      %26 = vector.broadcast %25 : vector<128x1xf32> to vector<128x128xf32>
      %27 = arith.mulf %24, %26 : vector<128x128xf32>
      %c0_22 = arith.constant 0 : index
      %c0_23 = arith.constant 0 : index
      %28 = vector.load %arg8[%c0_22, %c0_23] : memref<1x128xf32, #tpu.memory_space<vmem>>, vector<1x128xf32>
      %29 = vector.broadcast %28 : vector<1x128xf32> to vector<128x128xf32>
      %30 = arith.addf %27, %29 : vector<128x128xf32>
      %cst_24 = arith.constant 0.000000e+00 : f32
      %31 = vector.broadcast %cst_24 : f32 to vector<128x128xf32>
      %32 = arith.maximumf %30, %31 : vector<128x128xf32>
      %c128_i32_25 = arith.constant 128 : i32
      %33 = arith.muli %arg0, %c128_i32_25 : i32
      %34 = tpu.assume_multiple %33, 128 : i32
      %35 = arith.index_cast %34 : i32 to index
      %c0_26 = arith.constant 0 : index
      %36 = vector.load %arg4[%35, %c0_26] : memref<128x128xf32, #tpu.memory_space<vmem>>, vector<128x128xf32>
      %37 = arith.addf %32, %36 : vector<128x128xf32>
      %c0_27 = arith.constant 0 : index
      %c0_28 = arith.constant 0 : index
      %38 = vector.load %arg10[%c0_27, %c0_28] : memref<128x128xf32, #tpu.memory_space<vmem>>, vector<128x128xf32>
      tpu.vector_store %arg10[%c0_27, %c0_28], %37 {strides = array<i32>} : memref<128x128xf32, #tpu.memory_space<vmem>>, vector<128x128xf32>,
    } else {
    }
    return
  }
  func.func @transform_0(%arg0: i32, %arg1: i32) -> i32 {
    %c0_i32 = arith.constant 0 : i32
    %c0_i32_0 = arith.constant 0 : i32
    return %c0_i32 : i32
  }
  func.func @transform_1(%arg0: i32, %arg1: i32) -> (i32, i32) {
    %c0_i32 = arith.constant 0 : i32
    return %arg0, %arg1 : i32, i32
  }
  func.func @transform_2(%arg0: i32, %arg1: i32) -> (i32, i32) {
    %c0_i32 = arith.constant 0 : i32
    %c0_i32_0 = arith.constant 0 : i32
    %c0_i32_1 = arith.constant 0 : i32
    return %c0_i32, %c0_i32_0 : i32, i32
  }
  func.func @transform_3(%arg0: i32, %arg1: i32) -> (i32, i32) {
    %c0_i32 = arith.constant 0 : i32
    %c0_i32_0 = arith.constant 0 : i32
    %c0_i32_1 = arith.constant 0 : i32
    return %c0_i32, %c0_i32_0 : i32, i32
  }
  func.func @transform_4(%arg0: i32, %arg1: i32) -> (i32, i32) {
    %c0_i32 = arith.constant 0 : i32
    %c0_i32_0 = arith.constant 0 : i32
    %c0_i32_1 = arith.constant 0 : i32
    return %c0_i32, %c0_i32_0 : i32, i32
  }
  func.func @transform_5(%arg0: i32, %arg1: i32) -> (i32, i32) {
    %c0_i32 = arith.constant 0 : i32
    %c0_i32_0 = arith.constant 0 : i32
    %c0_i32_1 = arith.constant 0 : i32
    return %c0_i32, %c0_i32_0 : i32, i32
  }
  func.func @transform_6(%arg0: i32, %arg1: i32) -> (i32, i32) {
    %c0_i32 = arith.constant 0 : i32
    %c0_i32_0 = arith.constant 0 : i32
    %c0_i32_1 = arith.constant 0 : i32
    return %c0_i32, %c0_i32_0 : i32, i32
  }
  func.func @transform_7(%arg0: i32, %arg1: i32) -> (i32, i32) {
    %c0_i32 = arith.constant 0 : i32
    %c0_i32_0 = arith.constant 0 : i32
    return %arg0, %c0_i32 : i32, i32
  }
  func.func @transform_8(%arg0: i32, %arg1: i32) -> (i32, i32) {
    %c0_i32 = arith.constant 0 : i32
    %c0_i32_0 = arith.constant 0 : i32
    return %arg0, %c0_i32 : i32, i32
  }
}

</mosaic_0001>

<llo_original>
// kernel: tpu_custom_call.1
$region0: #{tpu_custom_call.1}
  #allocation0 [shape = 'u32[]', space=smem, size = 0x4, offset = 0x4, fixed_abs, tag = 'smem constant byte address 0x4 - core index']
  #allocation1 [shape = 'u32[144,128]{1,0:T(1,128)}', space=vmem, size = 0x12000, scoped, tag = 'internal scratch']
  #allocation2 [shape = 'f32[1]{0:T(128)S(6)}', space=smem, size = 0x200, scoped, tag = 'scoped memory for tpu_custom_call.1']
  %s0 = inlined_call_operand.<no memory space> [shape: f32[1], index: 0, kind: input, shape index: {}]
  %s1 = inlined_call_operand.vmem [shape: f32[128,128], index: 1, kind: input, shape index: {}]
  %s2 = inlined_call_operand.hbm [shape: f32[128,128], index: 2, kind: input, shape index: {}]
  %s3 = inlined_call_operand.hbm [shape: f32[128,128], index: 3, kind: input, shape index: {}]
  %s4 = inlined_call_operand.vmem [shape: f32[1,128], index: 4, kind: input, shape index: {}]
  %s5 = inlined_call_operand.hbm [shape: f32[128,128], index: 5, kind: input, shape index: {}]
  %s6 = inlined_call_operand.vmem [shape: f32[1,128], index: 6, kind: input, shape index: {}]
  %s7 = inlined_call_operand.vmem [shape: f32[128,1], index: 7, kind: input, shape index: {}]
  %s8 = inlined_call_operand.hbm [shape: f32[128,128], index: 8, kind: output, shape index: {}]
  %s9 = sld [smem:[#allocation0]]
  $region62: #{tpu_custom_call.1} parent=0
    _
  %s11 = ssub.s32 1, %s9
  %s12 = scalar_select 0, %s11, %s9
  %13 = sst [smem:[#allocation2]] %s0
  $region1: #{tpu_custom_call.1} parent=0
    #allocation3 [shape = 'u8[65536]{0}', space=vmem, size = 0x10000, scoped, tag = 'input window, operand 2, single buffered']
    #allocation4 [shape = 's32[1]{0}', space=sflag, size = 0x4, scoped, tag = 'scoped memory for tpu_custom_call.1']
    #allocation5 [shape = 's32[1]{0}', space=sflag, size = 0x4, scoped, tag = 'scoped memory for tpu_custom_call.1']
    #allocation6 [shape = 'u8[65536]{0}', space=vmem, size = 0x10000, scoped, tag = 'input window, operand 3, single buffered']
    #allocation7 [shape = 's32[1]{0}', space=sflag, size = 0x4, scoped, tag = 'scoped memory for tpu_custom_call.1']
    #allocation8 [shape = 'u8[65536]{0}', space=vmem, size = 0x10000, scoped, tag = 'input window, operand 5, single buffered']
    #allocation9 [shape = 'u8[65536]{0}', space=vmem, size = 0x10000, scoped, tag = 'output window, operand 0, single buffered']
    %14 = vsyncpa [#allocation4], 0
    %15 = vsyncpa [#allocation7], 0
    %16 = vsyncpa [#allocation5], 0
    // Predicated region
    $region2: #{tpu_custom_call.1} parent=1 // pred_check
      _
    $region3: #{tpu_custom_call.1} parent=1 // pred_check_branch
      %18 = sbr.rel (0) target = $region5
    $region4: #{tpu_custom_call.1} parent=1 // pred_region
      _
    $region5: #{tpu_custom_call.1} parent=1 // pred_fallthru
      _
    // Predicated region
    $region6: #{tpu_custom_call.1} parent=1 // pred_check
      _
    $region7: #{tpu_custom_call.1} parent=1 // pred_check_branch
      %20 = sbr.rel (0) target = $region9
    $region8: #{tpu_custom_call.1} parent=1 // pred_region
      _
    $region9: #{tpu_custom_call.1} parent=1 // pred_fallthru
      _
    // Predicated region
    $region10: #{tpu_custom_call.1} parent=1 // pred_check
      _
    $region11: #{tpu_custom_call.1} parent=1 // pred_check_branch
      %22 = sbr.rel (0) target = $region13
    $region12: #{tpu_custom_call.1} parent=1 // pred_region
      %s24 = ssub.s32 2048, 2048
      %25 = vsyncadd [#allocation4], %s24
      %s26 = sshll.u32 [#allocation3], 4
      %s27 = int_to_ptr.vmem [resolvable:$true] %s26
      %32 = dma.hbm_to_vmem [thread:$0]  %s2, 2048, %s27, [#allocation4], 128, 128, 8
    $region13: #{tpu_custom_call.1} parent=1 // pred_fallthru
      _
    // Predicated region
    $region14: #{tpu_custom_call.1} parent=1 // pred_check
      _
    $region15: #{tpu_custom_call.1} parent=1 // pred_check_branch
      %34 = sbr.rel (0) target = $region17
    $region16: #{tpu_custom_call.1} parent=1 // pred_region
      %s36 = ssub.s32 2048, 2048
      %37 = vsyncadd [#allocation7], %s36
      %s38 = sshll.u32 [#allocation6], 4
      %s39 = int_to_ptr.vmem [resolvable:$true] %s38
      %44 = dma.hbm_to_vmem [thread:$0]  %s3, 2048, %s39, [#allocation7], 128, 128, 8
    $region17: #{tpu_custom_call.1} parent=1 // pred_fallthru
      _
    // Predicated region
    $region18: #{tpu_custom_call.1} parent=1 // pred_check
      _
    $region19: #{tpu_custom_call.1} parent=1 // pred_check_branch
      %46 = sbr.rel (0) target = $region21
    $region20: #{tpu_custom_call.1} parent=1 // pred_region
      _
    $region21: #{tpu_custom_call.1} parent=1 // pred_fallthru
      _
    // Predicated region
    $region22: #{tpu_custom_call.1} parent=1 // pred_check
      _
    $region23: #{tpu_custom_call.1} parent=1 // pred_check_branch
      %48 = sbr.rel (0) target = $region25
    $region24: #{tpu_custom_call.1} parent=1 // pred_region
      %s50 = ssub.s32 2048, 2048
      %51 = vsyncadd [#allocation7], %s50
      %s52 = sshll.u32 [#allocation8], 4
      %s53 = int_to_ptr.vmem [resolvable:$true] %s52
      %58 = dma.hbm_to_vmem [thread:$0]  %s5, 2048, %s53, [#allocation7], 128, 128, 8
    $region25: #{tpu_custom_call.1} parent=1 // pred_fallthru
      _
    // Predicated region
    $region26: #{tpu_custom_call.1} parent=1 // pred_check
      _
    $region27: #{tpu_custom_call.1} parent=1 // pred_check_branch
      %60 = sbr.rel (0) target = $region29
    $region28: #{tpu_custom_call.1} parent=1 // pred_region
      _
    $region29: #{tpu_custom_call.1} parent=1 // pred_fallthru
      _
    // Predicated region
    $region30: #{tpu_custom_call.1} parent=1 // pred_check
      _
    $region31: #{tpu_custom_call.1} parent=1 // pred_check_branch
      %62 = sbr.rel (0) target = $region33
    $region32: #{tpu_custom_call.1} parent=1 // pred_region
      _
    $region33: #{tpu_custom_call.1} parent=1 // pred_fallthru
      _
    // Predicated region
    $region34: #{tpu_custom_call.1} parent=1 // pred_check
      _
    $region35: #{tpu_custom_call.1} parent=1 // pred_check_branch
      %64 = sbr.rel (0) target = $region37
    $region36: #{tpu_custom_call.1} parent=1 // pred_region
      %65 = dma.done [#allocation4], 2048
    $region37: #{tpu_custom_call.1} parent=1 // pred_fallthru
      _
    // Predicated region
    $region38: #{tpu_custom_call.1} parent=1 // pred_check
      _
    $region39: #{tpu_custom_call.1} parent=1 // pred_check_branch
      %67 = sbr.rel (0) target = $region41
    $region40: #{tpu_custom_call.1} parent=1 // pred_region
      %68 = dma.done [#allocation7], 2048
    $region41: #{tpu_custom_call.1} parent=1 // pred_fallthru
      _
    // Predicated region
    $region42: #{tpu_custom_call.1} parent=1 // pred_check
      _
    $region43: #{tpu_custom_call.1} parent=1 // pred_check_branch
      %70 = sbr.rel (0) target = $region45
    $region44: #{tpu_custom_call.1} parent=1 // pred_region
      %71 = dma.done [#allocation7], 2048
    $region45: #{tpu_custom_call.1} parent=1 // pred_fallthru
      _
    %p72 = scmp.eq.s32.totalorder 0, 0
    // Predicated region
    $region46: #{tpu_custom_call.1} parent=1 // pred_check
      %p73 = pneg %p72
    $region47: #{tpu_custom_call.1} parent=1 // pred_check_branch
      %75 = sbr.rel (%p73) target = $region49
    $region48: #{tpu_custom_call.1} parent=1 // pred_region
      %s76 = sld [smem:[#allocation2]]
      %s77 = smul.u32 0, 128
      %s78 = scalar_lea.vmem [#allocation3], %s77
      %v79 = vld [vmem:[%s78] sm:$0xff]
      %v80 = vld [vmem:[%s78 + $0x8] sm:$0xff]
      %v81 = vld [vmem:[%s78 + $0x10] sm:$0xff]
      %v82 = vld [vmem:[%s78 + $0x18] sm:$0xff]
      %v83 = vld [vmem:[%s78 + $0x20] sm:$0xff]
      %v84 = vld [vmem:[%s78 + $0x28] sm:$0xff]
      %v85 = vld [vmem:[%s78 + $0x30] sm:$0xff]
      %v86 = vld [vmem:[%s78 + $0x38] sm:$0xff]
      %v87 = vld [vmem:[%s78 + $0x40] sm:$0xff]
      %v88 = vld [vmem:[%s78 + $0x48] sm:$0xff]
      %v89 = vld [vmem:[%s78 + $0x50] sm:$0xff]
      %v90 = vld [vmem:[%s78 + $0x58] sm:$0xff]
      %v91 = vld [vmem:[%s78 + $0x60] sm:$0xff]
      %v92 = vld [vmem:[%s78 + $0x68] sm:$0xff]
      %v93 = vld [vmem:[%s78 + $0x70] sm:$0xff]
      %v94 = vld [vmem:[%s78 + $0x78] sm:$0xff]
      %v95 = vstv %s76
      %v96 = vmul.f32 %v95, %v79
      %v97 = vmul.f32 %v95, %v80
      %v98 = vmul.f32 %v95, %v81
      %v99 = vmul.f32 %v95, %v82
      %v100 = vmul.f32 %v95, %v83
      %v101 = vmul.f32 %v95, %v84
      %v102 = vmul.f32 %v95, %v85
      %v103 = vmul.f32 %v95, %v86
      %v104 = vmul.f32 %v95, %v87
      %v105 = vmul.f32 %v95, %v88
      %v106 = vmul.f32 %v95, %v89
      %v107 = vmul.f32 %v95, %v90
      %v108 = vmul.f32 %v95, %v91
      %v109 = vmul.f32 %v95, %v92
      %v110 = vmul.f32 %v95, %v93
      %v111 = vmul.f32 %v95, %v94
      %112 = vst [vmem:[#allocation9] sm:$0xff] %v96
      %113 = vst [vmem:[#allocation9 + $0x8] sm:$0xff] %v97
      %114 = vst [vmem:[#allocation9 + $0x10] sm:$0xff] %v98
      %115 = vst [vmem:[#allocation9 + $0x18] sm:$0xff] %v99
      %116 = vst [vmem:[#allocation9 + $0x20] sm:$0xff] %v100
      %117 = vst [vmem:[#allocation9 + $0x28] sm:$0xff] %v101
      %118 = vst [vmem:[#allocation9 + $0x30] sm:$0xff] %v102
      %119 = vst [vmem:[#allocation9 + $0x38] sm:$0xff] %v103
      %120 = vst [vmem:[#allocation9 + $0x40] sm:$0xff] %v104
      %121 = vst [vmem:[#allocation9 + $0x48] sm:$0xff] %v105
      %122 = vst [vmem:[#allocation9 + $0x50] sm:$0xff] %v106
      %123 = vst [vmem:[#allocation9 + $0x58] sm:$0xff] %v107
      %124 = vst [vmem:[#allocation9 + $0x60] sm:$0xff] %v108
      %125 = vst [vmem:[#allocation9 + $0x68] sm:$0xff] %v109
      %126 = vst [vmem:[#allocation9 + $0x70] sm:$0xff] %v110
      %127 = vst [vmem:[#allocation9 + $0x78] sm:$0xff] %v111
    $region49: #{tpu_custom_call.1} parent=1 // pred_fallthru
      _
    %v128 = vld [vmem:[#allocation9] sm:$0xff]
    %v129 = vld [vmem:[#allocation9 + $0x8] sm:$0xff]
    %v130 = vld [vmem:[#allocation9 + $0x10] sm:$0xff]
    %v131 = vld [vmem:[#allocation9 + $0x18] sm:$0xff]
    %v132 = vld [vmem:[#allocation9 + $0x20] sm:$0xff]
    %v133 = vld [vmem:[#allocation9 + $0x28] sm:$0xff]
    %v134 = vld [vmem:[#allocation9 + $0x30] sm:$0xff]
    %v135 = vld [vmem:[#allocation9 + $0x38] sm:$0xff]
    %v136 = vld [vmem:[#allocation9 + $0x40] sm:$0xff]
    %v137 = vld [vmem:[#allocation9 + $0x48] sm:$0xff]
    %v138 = vld [vmem:[#allocation9 + $0x50] sm:$0xff]
    %v139 = vld [vmem:[#allocation9 + $0x58] sm:$0xff]
    %v140 = vld [vmem:[#allocation9 + $0x60] sm:$0xff]
    %v141 = vld [vmem:[#allocation9 + $0x68] sm:$0xff]
    %v142 = vld [vmem:[#allocation9 + $0x70] sm:$0xff]
    %v143 = vld [vmem:[#allocation9 + $0x78] sm:$0xff]
    %v144 = vld [vmem:[%s1] sm:$0xff]
    %v145 = vld [vmem:[%s1 + $0x8] sm:$0xff]
    %v146 = vld [vmem:[%s1 + $0x10] sm:$0xff]
    %v147 = vld [vmem:[%s1 + $0x18] sm:$0xff]
    %v148 = vld [vmem:[%s1 + $0x20] sm:$0xff]
    %v149 = vld [vmem:[%s1 + $0x28] sm:$0xff]
    %v150 = vld [vmem:[%s1 + $0x30] sm:$0xff]
    %v151 = vld [vmem:[%s1 + $0x38] sm:$0xff]
    %v152 = vld [vmem:[%s1 + $0x40] sm:$0xff]
    %v153 = vld [vmem:[%s1 + $0x48] sm:$0xff]
    %v154 = vld [vmem:[%s1 + $0x50] sm:$0xff]
    %v155 = vld [vmem:[%s1 + $0x58] sm:$0xff]
    %v156 = vld [vmem:[%s1 + $0x60] sm:$0xff]
    %v157 = vld [vmem:[%s1 + $0x68] sm:$0xff]
    %v158 = vld [vmem:[%s1 + $0x70] sm:$0xff]
    %v159 = vld [vmem:[%s1 + $0x78] sm:$0xff]
    %s160 = smul.u32 0, 128
    %s161 = scalar_lea.vmem [#allocation3], %s160
    %v162 = vld [vmem:[%s161] sm:$0xff]
    %v163 = vld [vmem:[%s161 + $0x8] sm:$0xff]
    %v164 = vld [vmem:[%s161 + $0x10] sm:$0xff]
    %v165 = vld [vmem:[%s161 + $0x18] sm:$0xff]
    %v166 = vld [vmem:[%s161 + $0x20] sm:$0xff]
    %v167 = vld [vmem:[%s161 + $0x28] sm:$0xff]
    %v168 = vld [vmem:[%s161 + $0x30] sm:$0xff]
    %v169 = vld [vmem:[%s161 + $0x38] sm:$0xff]
    %v170 = vld [vmem:[%s161 + $0x40] sm:$0xff]
    %v171 = vld [vmem:[%s161 + $0x48] sm:$0xff]
    %v172 = vld [vmem:[%s161 + $0x50] sm:$0xff]
    %v173 = vld [vmem:[%s161 + $0x58] sm:$0xff]
    %v174 = vld [vmem:[%s161 + $0x60] sm:$0xff]
    %v175 = vld [vmem:[%s161 + $0x68] sm:$0xff]
    %v176 = vld [vmem:[%s161 + $0x70] sm:$0xff]
    %v177 = vld [vmem:[%s161 + $0x78] sm:$0xff]
    %178 = vmatprep.subr.mxu0 0.0
    %179 = vmatpush1.msra.mxu0 %v177
    %180 = vmatprep.subr.mxu0 0.0
    %181 = vmatpush1.msra.mxu0 %v176
    %182 = vmatprep.subr.mxu0 0.0
    %183 = vmatpush1.msra.mxu0 %v175
    %184 = vmatprep.subr.mxu0 0.0
    %185 = vmatpush1.msra.mxu0 %v174
    %186 = vmatprep.subr.mxu0 0.0
    %187 = vmatpush1.msra.mxu0 %v173
    %188 = vmatprep.subr.mxu0 0.0
    %189 = vmatpush1.msra.mxu0 %v172
    %190 = vmatprep.subr.mxu0 0.0
    %191 = vmatpush1.msra.mxu0 %v171
    %192 = vmatprep.subr.mxu0 0.0
    %193 = vmatpush1.msra.mxu0 %v170
    %194 = vmatprep.subr.mxu0 0.0
    %195 = vmatpush1.msra.mxu0 %v169
    %196 = vmatprep.subr.mxu0 0.0
    %197 = vmatpush1.msra.mxu0 %v168
    %198 = vmatprep.subr.mxu0 0.0
    %199 = vmatpush1.msra.mxu0 %v167
    %200 = vmatprep.subr.mxu0 0.0
    %201 = vmatpush1.msra.mxu0 %v166
    %202 = vmatprep.subr.mxu0 0.0
    %203 = vmatpush1.msra.mxu0 %v165
    %204 = vmatprep.subr.mxu0 0.0
    %205 = vmatpush1.msra.mxu0 %v164
    %206 = vmatprep.subr.mxu0 0.0
    %207 = vmatpush1.msra.mxu0 %v163
    %208 = vmatprep.subr.mxu0 0.0
    %209 = vmatpush1.msra.mxu0 %v162
    %210 = vmatprep.subr.mxu0 0.0
    %211 = vmatpush2.msra.mxu0 0.0
    %212 = vmatprep.subr.mxu0 0.0
    %213 = vmatpush2.msra.mxu0 0.0
    %214 = vmatprep.subr.mxu0 0.0
    %215 = vmatpush2.msra.mxu0 0.0
    %216 = vmatprep.subr.mxu0 0.0
    %217 = vmatpush2.msra.mxu0 0.0
    %218 = vmatprep.subr.mxu0 0.0
    %219 = vmatpush2.msra.mxu0 0.0
    %220 = vmatprep.subr.mxu0 0.0
    %221 = vmatpush2.msra.mxu0 0.0
    %222 = vmatprep.subr.mxu0 0.0
    %223 = vmatpush2.msra.mxu0 0.0
    %224 = vmatprep.subr.mxu0 0.0
    %225 = vmatpush2.msra.mxu0 0.0
    %226 = vmatprep.subr.mxu0 0.0
    %227 = vmatpush2.msra.mxu0 0.0
    %228 = vmatprep.subr.mxu0 0.0
    %229 = vmatpush2.msra.mxu0 0.0
    %230 = vmatprep.subr.mxu0 0.0
    %231 = vmatpush2.msra.mxu0 0.0
    %232 = vmatprep.subr.mxu0 0.0
    %233 = vmatpush2.msra.mxu0 0.0
    %234 = vmatprep.subr.mxu0 0.0
    %235 = vmatpush2.msra.mxu0 0.0
    %236 = vmatprep.subr.mxu0 0.0
    %237 = vmatpush2.msra.mxu0 0.0
    %238 = vmatprep.subr.mxu0 0.0
    %239 = vmatpush2.msra.mxu0 0.0
    %240 = vmatprep.subr.mxu0 0.0
    %241 = vmatpush2.msra.mxu0 0.0
    %242 = vmatprep.mubr.f32.mxu0 0.0
    %243 = vmatmul.mubr.f32.gmra.mxu0 %v144
    %v244 = vpop.f32.mrf.mxu0
    %v245 = vadd.f32 0.0, %v244
    %v246 = vpop.f32.mrf.mxu0
    %247 = vmatprep.mubr.f32.mxu0 0.0
    %248 = vmatmul.mubr.f32.gmra.mxu0 %v145
    %v249 = vpop.f32.mrf.mxu0
    %v250 = vadd.f32 0.0, %v249
    %v251 = vpop.f32.mrf.mxu0
    %252 = vmatprep.mubr.f32.mxu0 0.0
    %253 = vmatmul.mubr.f32.gmra.mxu0 %v146
    %v254 = vpop.f32.mrf.mxu0
    %v255 = vadd.f32 0.0, %v254
    %v256 = vpop.f32.mrf.mxu0
    %257 = vmatprep.mubr.f32.mxu0 0.0
    %258 = vmatmul.mubr.f32.gmra.mxu0 %v147
    %v259 = vpop.f32.mrf.mxu0
    %v260 = vadd.f32 0.0, %v259
    %v261 = vpop.f32.mrf.mxu0
    %262 = vmatprep.mubr.f32.mxu0 0.0
    %263 = vmatmul.mubr.f32.gmra.mxu0 %v148
    %v264 = vpop.f32.mrf.mxu0
    %v265 = vadd.f32 0.0, %v264
    %v266 = vpop.f32.mrf.mxu0
    %267 = vmatprep.mubr.f32.mxu0 0.0
    %268 = vmatmul.mubr.f32.gmra.mxu0 %v149
    %v269 = vpop.f32.mrf.mxu0
    %v270 = vadd.f32 0.0, %v269
    %v271 = vpop.f32.mrf.mxu0
    %272 = vmatprep.mubr.f32.mxu0 0.0
    %273 = vmatmul.mubr.f32.gmra.mxu0 %v150
    %v274 = vpop.f32.mrf.mxu0
    %v275 = vadd.f32 0.0, %v274
    %v276 = vpop.f32.mrf.mxu0
    %277 = vmatprep.mubr.f32.mxu0 0.0
    %278 = vmatmul.mubr.f32.gmra.mxu0 %v151
    %v279 = vpop.f32.mrf.mxu0
    %v280 = vadd.f32 0.0, %v279
    %v281 = vpop.f32.mrf.mxu0
    %282 = vmatprep.mubr.f32.mxu0 0.0
    %283 = vmatmul.mubr.f32.gmra.mxu0 %v152
    %v284 = vpop.f32.mrf.mxu0
    %v285 = vadd.f32 0.0, %v284
    %v286 = vpop.f32.mrf.mxu0
    %287 = vmatprep.mubr.f32.mxu0 0.0
    %288 = vmatmul.mubr.f32.gmra.mxu0 %v153
    %v289 = vpop.f32.mrf.mxu0
    %v290 = vadd.f32 0.0, %v289
    %v291 = vpop.f32.mrf.mxu0
    %292 = vmatprep.mubr.f32.mxu0 0.0
    %293 = vmatmul.mubr.f32.gmra.mxu0 %v154
    %v294 = vpop.f32.mrf.mxu0
    %v295 = vadd.f32 0.0, %v294
    %v296 = vpop.f32.mrf.mxu0
    %297 = vmatprep.mubr.f32.mxu0 0.0
    %298 = vmatmul.mubr.f32.gmra.mxu0 %v155
    %v299 = vpop.f32.mrf.mxu0
    %v300 = vadd.f32 0.0, %v299
    %v301 = vpop.f32.mrf.mxu0
    %302 = vmatprep.mubr.f32.mxu0 0.0
    %303 = vmatmul.mubr.f32.gmra.mxu0 %v156
    %v304 = vpop.f32.mrf.mxu0
    %v305 = vadd.f32 0.0, %v304
    %v306 = vpop.f32.mrf.mxu0
    %307 = vmatprep.mubr.f32.mxu0 0.0
    %308 = vmatmul.mubr.f32.gmra.mxu0 %v157
    %v309 = vpop.f32.mrf.mxu0
    %v310 = vadd.f32 0.0, %v309
    %v311 = vpop.f32.mrf.mxu0
    %312 = vmatprep.mubr.f32.mxu0 0.0
    %313 = vmatmul.mubr.f32.gmra.mxu0 %v158
    %v314 = vpop.f32.mrf.mxu0
    %v315 = vadd.f32 0.0, %v314
    %v316 = vpop.f32.mrf.mxu0
    %317 = vmatprep.mubr.f32.mxu0 0.0
    %318 = vmatmul.mubr.f32.gmra.mxu0 %v159
    %v319 = vpop.f32.mrf.mxu0
    %v320 = vadd.f32 0.0, %v319
    %v321 = vpop.f32.mrf.mxu0
    %322 = vdwg.mxu0
    %v323 = vadd.f32 %v128, %v245
    %v324 = vadd.f32 %v129, %v250
    %v325 = vadd.f32 %v130, %v255
    %v326 = vadd.f32 %v131, %v260
    %v327 = vadd.f32 %v132, %v265
    %v328 = vadd.f32 %v133, %v270
    %v329 = vadd.f32 %v134, %v275
    %v330 = vadd.f32 %v135, %v280
    %v331 = vadd.f32 %v136, %v285
    %v332 = vadd.f32 %v137, %v290
    %v333 = vadd.f32 %v138, %v295
    %v334 = vadd.f32 %v139, %v300
    %v335 = vadd.f32 %v140, %v305
    %v336 = vadd.f32 %v141, %v310
    %v337 = vadd.f32 %v142, %v315
    %v338 = vadd.f32 %v143, %v320
    %339 = vst [vmem:[#allocation9] sm:$0xff] %v323
    %340 = vst [vmem:[#allocation9 + $0x8] sm:$0xff] %v324
    %341 = vst [vmem:[#allocation9 + $0x10] sm:$0xff] %v325
    %342 = vst [vmem:[#allocation9 + $0x18] sm:$0xff] %v326
    %343 = vst [vmem:[#allocation9 + $0x20] sm:$0xff] %v327
    %344 = vst [vmem:[#allocation9 + $0x28] sm:$0xff] %v328
    %345 = vst [vmem:[#allocation9 + $0x30] sm:$0xff] %v329
    %346 = vst [vmem:[#allocation9 + $0x38] sm:$0xff] %v330
    %347 = vst [vmem:[#allocation9 + $0x40] sm:$0xff] %v331
    %348 = vst [vmem:[#allocation9 + $0x48] sm:$0xff] %v332
    %349 = vst [vmem:[#allocation9 + $0x50] sm:$0xff] %v333
    %350 = vst [vmem:[#allocation9 + $0x58] sm:$0xff] %v334
    %351 = vst [vmem:[#allocation9 + $0x60] sm:$0xff] %v335
    %352 = vst [vmem:[#allocation9 + $0x68] sm:$0xff] %v336
    %353 = vst [vmem:[#allocation9 + $0x70] sm:$0xff] %v337
    %354 = vst [vmem:[#allocation9 + $0x78] sm:$0xff] %v338
    // Predicated region
    $region50: #{tpu_custom_call.1} parent=1 // pred_check
      %p355 = pneg %p72
    $region51: #{tpu_custom_call.1} parent=1 // pred_check_branch
      %357 = sbr.rel (%p355) target = $region53
    $region52: #{tpu_custom_call.1} parent=1 // pred_region
      %v358 = vld [vmem:[#allocation9] sm:$0xff]
      %v359 = vld [vmem:[#allocation9 + $0x8] sm:$0xff]
      %v360 = vld [vmem:[#allocation9 + $0x10] sm:$0xff]
      %v361 = vld [vmem:[#allocation9 + $0x18] sm:$0xff]
      %v362 = vld [vmem:[#allocation9 + $0x20] sm:$0xff]
      %v363 = vld [vmem:[#allocation9 + $0x28] sm:$0xff]
      %v364 = vld [vmem:[#allocation9 + $0x30] sm:$0xff]
      %v365 = vld [vmem:[#allocation9 + $0x38] sm:$0xff]
      %v366 = vld [vmem:[#allocation9 + $0x40] sm:$0xff]
      %v367 = vld [vmem:[#allocation9 + $0x48] sm:$0xff]
      %v368 = vld [vmem:[#allocation9 + $0x50] sm:$0xff]
      %v369 = vld [vmem:[#allocation9 + $0x58] sm:$0xff]
      %v370 = vld [vmem:[#allocation9 + $0x60] sm:$0xff]
      %v371 = vld [vmem:[#allocation9 + $0x68] sm:$0xff]
      %v372 = vld [vmem:[#allocation9 + $0x70] sm:$0xff]
      %v373 = vld [vmem:[#allocation9 + $0x78] sm:$0xff]
      %v374 = vld [vmem:[#allocation6] sm:$0xff]
      %v375 = vld [vmem:[#allocation6 + $0x8] sm:$0xff]
      %v376 = vld [vmem:[#allocation6 + $0x10] sm:$0xff]
      %v377 = vld [vmem:[#allocation6 + $0x18] sm:$0xff]
      %v378 = vld [vmem:[#allocation6 + $0x20] sm:$0xff]
      %v379 = vld [vmem:[#allocation6 + $0x28] sm:$0xff]
      %v380 = vld [vmem:[#allocation6 + $0x30] sm:$0xff]
      %v381 = vld [vmem:[#allocation6 + $0x38] sm:$0xff]
      %v382 = vld [vmem:[#allocation6 + $0x40] sm:$0xff]
      %v383 = vld [vmem:[#allocation6 + $0x48] sm:$0xff]
      %v384 = vld [vmem:[#allocation6 + $0x50] sm:$0xff]
      %v385 = vld [vmem:[#allocation6 + $0x58] sm:$0xff]
      %v386 = vld [vmem:[#allocation6 + $0x60] sm:$0xff]
      %v387 = vld [vmem:[#allocation6 + $0x68] sm:$0xff]
      %v388 = vld [vmem:[#allocation6 + $0x70] sm:$0xff]
      %v389 = vld [vmem:[#allocation6 + $0x78] sm:$0xff]
      %v390 = vld [vmem:[%s4] sm:$0x1]
      %v392 = vlaneseq
      %v393 = vshrl.u32 %v392, 7
      %v394 = vsub.s32 0, %v393
      %v395 = vrot.slane %v390, %v394
      %397 = vmatprep.subr.mxu0 0.0
      %398 = vmatpush1.msra.mxu0 %v389
      %399 = vmatprep.subr.mxu0 0.0
      %400 = vmatpush1.msra.mxu0 %v388
      %401 = vmatprep.subr.mxu0 0.0
      %402 = vmatpush1.msra.mxu0 %v387
      %403 = vmatprep.subr.mxu0 0.0
      %404 = vmatpush1.msra.mxu0 %v386
      %405 = vmatprep.subr.mxu0 0.0
      %406 = vmatpush1.msra.mxu0 %v385
      %407 = vmatprep.subr.mxu0 0.0
      %408 = vmatpush1.msra.mxu0 %v384
      %409 = vmatprep.subr.mxu0 0.0
      %410 = vmatpush1.msra.mxu0 %v383
      %411 = vmatprep.subr.mxu0 0.0
      %412 = vmatpush1.msra.mxu0 %v382
      %413 = vmatprep.subr.mxu0 0.0
      %414 = vmatpush1.msra.mxu0 %v381
      %415 = vmatprep.subr.mxu0 0.0
      %416 = vmatpush1.msra.mxu0 %v380
      %417 = vmatprep.subr.mxu0 0.0
      %418 = vmatpush1.msra.mxu0 %v379
      %419 = vmatprep.subr.mxu0 0.0
      %420 = vmatpush1.msra.mxu0 %v378
      %421 = vmatprep.subr.mxu0 0.0
      %422 = vmatpush1.msra.mxu0 %v377
      %423 = vmatprep.subr.mxu0 0.0
      %424 = vmatpush1.msra.mxu0 %v376
      %425 = vmatprep.subr.mxu0 0.0
      %426 = vmatpush1.msra.mxu0 %v375
      %427 = vmatprep.subr.mxu0 0.0
      %428 = vmatpush1.msra.mxu0 %v374
      %429 = vmatprep.subr.mxu0 0.0
      %430 = vmatpush2.msra.mxu0 0.0
      %431 = vmatprep.subr.mxu0 0.0
      %432 = vmatpush2.msra.mxu0 0.0
      %433 = vmatprep.subr.mxu0 0.0
      %434 = vmatpush2.msra.mxu0 0.0
      %435 = vmatprep.subr.mxu0 0.0
      %436 = vmatpush2.msra.mxu0 0.0
      %437 = vmatprep.subr.mxu0 0.0
      %438 = vmatpush2.msra.mxu0 0.0
      %439 = vmatprep.subr.mxu0 0.0
      %440 = vmatpush2.msra.mxu0 0.0
      %441 = vmatprep.subr.mxu0 0.0
      %442 = vmatpush2.msra.mxu0 0.0
      %443 = vmatprep.subr.mxu0 0.0
      %444 = vmatpush2.msra.mxu0 0.0
      %445 = vmatprep.subr.mxu0 0.0
      %446 = vmatpush2.msra.mxu0 0.0
      %447 = vmatprep.subr.mxu0 0.0
      %448 = vmatpush2.msra.mxu0 0.0
      %449 = vmatprep.subr.mxu0 0.0
      %450 = vmatpush2.msra.mxu0 0.0
      %451 = vmatprep.subr.mxu0 0.0
      %452 = vmatpush2.msra.mxu0 0.0
      %453 = vmatprep.subr.mxu0 0.0
      %454 = vmatpush2.msra.mxu0 0.0
      %455 = vmatprep.subr.mxu0 0.0
      %456 = vmatpush2.msra.mxu0 0.0
      %457 = vmatprep.subr.mxu0 0.0
      %458 = vmatpush2.msra.mxu0 0.0
      %459 = vmatprep.subr.mxu0 0.0
      %460 = vmatpush2.msra.mxu0 0.0
      %461 = vmatprep.mubr.f32.mxu0 0.0
      %462 = vmatmul.mubr.f32.gmra.mxu0 %v358
      %v463 = vpop.f32.mrf.mxu0
      %v464 = vadd.f32 %v395, %v463
      %v465 = vpop.f32.mrf.mxu0
      %466 = vmatprep.mubr.f32.mxu0 0.0
      %467 = vmatmul.mubr.f32.gmra.mxu0 %v359
      %v468 = vpop.f32.mrf.mxu0
      %v469 = vadd.f32 %v395, %v468
      %v470 = vpop.f32.mrf.mxu0
      %471 = vmatprep.mubr.f32.mxu0 0.0
      %472 = vmatmul.mubr.f32.gmra.mxu0 %v360
      %v473 = vpop.f32.mrf.mxu0
      %v474 = vadd.f32 %v395, %v473
      %v475 = vpop.f32.mrf.mxu0
      %476 = vmatprep.mubr.f32.mxu0 0.0
      %477 = vmatmul.mubr.f32.gmra.mxu0 %v361
      %v478 = vpop.f32.mrf.mxu0
      %v479 = vadd.f32 %v395, %v478
      %v480 = vpop.f32.mrf.mxu0
      %481 = vmatprep.mubr.f32.mxu0 0.0
      %482 = vmatmul.mubr.f32.gmra.mxu0 %v362
      %v483 = vpop.f32.mrf.mxu0
      %v484 = vadd.f32 %v395, %v483
      %v485 = vpop.f32.mrf.mxu0
      %486 = vmatprep.mubr.f32.mxu0 0.0
      %487 = vmatmul.mubr.f32.gmra.mxu0 %v363
      %v488 = vpop.f32.mrf.mxu0
      %v489 = vadd.f32 %v395, %v488
      %v490 = vpop.f32.mrf.mxu0
      %491 = vmatprep.mubr.f32.mxu0 0.0
      %492 = vmatmul.mubr.f32.gmra.mxu0 %v364
      %v493 = vpop.f32.mrf.mxu0
      %v494 = vadd.f32 %v395, %v493
      %v495 = vpop.f32.mrf.mxu0
      %496 = vmatprep.mubr.f32.mxu0 0.0
      %497 = vmatmul.mubr.f32.gmra.mxu0 %v365
      %v498 = vpop.f32.mrf.mxu0
      %v499 = vadd.f32 %v395, %v498
      %v500 = vpop.f32.mrf.mxu0
      %501 = vmatprep.mubr.f32.mxu0 0.0
      %502 = vmatmul.mubr.f32.gmra.mxu0 %v366
      %v503 = vpop.f32.mrf.mxu0
      %v504 = vadd.f32 %v395, %v503
      %v505 = vpop.f32.mrf.mxu0
      %506 = vmatprep.mubr.f32.mxu0 0.0
      %507 = vmatmul.mubr.f32.gmra.mxu0 %v367
      %v508 = vpop.f32.mrf.mxu0
      %v509 = vadd.f32 %v395, %v508
      %v510 = vpop.f32.mrf.mxu0
      %511 = vmatprep.mubr.f32.mxu0 0.0
      %512 = vmatmul.mubr.f32.gmra.mxu0 %v368
      %v513 = vpop.f32.mrf.mxu0
      %v514 = vadd.f32 %v395, %v513
      %v515 = vpop.f32.mrf.mxu0
      %516 = vmatprep.mubr.f32.mxu0 0.0
      %517 = vmatmul.mubr.f32.gmra.mxu0 %v369
      %v518 = vpop.f32.mrf.mxu0
      %v519 = vadd.f32 %v395, %v518
      %v520 = vpop.f32.mrf.mxu0
      %521 = vmatprep.mubr.f32.mxu0 0.0
      %522 = vmatmul.mubr.f32.gmra.mxu0 %v370
      %v523 = vpop.f32.mrf.mxu0
      %v524 = vadd.f32 %v395, %v523
      %v525 = vpop.f32.mrf.mxu0
      %526 = vmatprep.mubr.f32.mxu0 0.0
      %527 = vmatmul.mubr.f32.gmra.mxu0 %v371
      %v528 = vpop.f32.mrf.mxu0
      %v529 = vadd.f32 %v395, %v528
      %v530 = vpop.f32.mrf.mxu0
      %531 = vmatprep.mubr.f32.mxu0 0.0
      %532 = vmatmul.mubr.f32.gmra.mxu0 %v372
      %v533 = vpop.f32.mrf.mxu0
      %v534 = vadd.f32 %v395, %v533
      %v535 = vpop.f32.mrf.mxu0
      %536 = vmatprep.mubr.f32.mxu0 0.0
      %537 = vmatmul.mubr.f32.gmra.mxu0 %v373
      %v538 = vpop.f32.mrf.mxu0
      %v539 = vadd.f32 %v395, %v538
      %v540 = vpop.f32.mrf.mxu0
      %541 = vdwg.mxu0
      %v542 = vmax.f32 %v464, 0.0
      %v543 = vmax.f32 %v469, 0.0
      %v544 = vmax.f32 %v474, 0.0
      %v545 = vmax.f32 %v479, 0.0
      %v546 = vmax.f32 %v484, 0.0
      %v547 = vmax.f32 %v489, 0.0
      %v548 = vmax.f32 %v494, 0.0
      %v549 = vmax.f32 %v499, 0.0
      %v550 = vmax.f32 %v504, 0.0
      %v551 = vmax.f32 %v509, 0.0
      %v552 = vmax.f32 %v514, 0.0
      %v553 = vmax.f32 %v519, 0.0
      %v554 = vmax.f32 %v524, 0.0
      %v555 = vmax.f32 %v529, 0.0
      %v556 = vmax.f32 %v534, 0.0
      %v557 = vmax.f32 %v539, 0.0
      %v558 = vld [vmem:[#allocation8] sm:$0xff]
      %v559 = vld [vmem:[#allocation8 + $0x8] sm:$0xff]
      %v560 = vld [vmem:[#allocation8 + $0x10] sm:$0xff]
      %v561 = vld [vmem:[#allocation8 + $0x18] sm:$0xff]
      %v562 = vld [vmem:[#allocation8 + $0x20] sm:$0xff]
      %v563 = vld [vmem:[#allocation8 + $0x28] sm:$0xff]
      %v564 = vld [vmem:[#allocation8 + $0x30] sm:$0xff]
      %v565 = vld [vmem:[#allocation8 + $0x38] sm:$0xff]
      %v566 = vld [vmem:[#allocation8 + $0x40] sm:$0xff]
      %v567 = vld [vmem:[#allocation8 + $0x48] sm:$0xff]
      %v568 = vld [vmem:[#allocation8 + $0x50] sm:$0xff]
      %v569 = vld [vmem:[#allocation8 + $0x58] sm:$0xff]
      %v570 = vld [vmem:[#allocation8 + $0x60] sm:$0xff]
      %v571 = vld [vmem:[#allocation8 + $0x68] sm:$0xff]
      %v572 = vld [vmem:[#allocation8 + $0x70] sm:$0xff]
      %v573 = vld [vmem:[#allocation8 + $0x78] sm:$0xff]
      %574 = vmatprep.subr.mxu0 0.0
      %575 = vmatpush1.msra.mxu0 %v573
      %576 = vmatprep.subr.mxu0 0.0
      %577 = vmatpush1.msra.mxu0 %v572
      %578 = vmatprep.subr.mxu0 0.0
      %579 = vmatpush1.msra.mxu0 %v571
      %580 = vmatprep.subr.mxu0 0.0
      %581 = vmatpush1.msra.mxu0 %v570
      %582 = vmatprep.subr.mxu0 0.0
      %583 = vmatpush1.msra.mxu0 %v569
      %584 = vmatprep.subr.mxu0 0.0
      %585 = vmatpush1.msra.mxu0 %v568
      %586 = vmatprep.subr.mxu0 0.0
      %587 = vmatpush1.msra.mxu0 %v567
      %588 = vmatprep.subr.mxu0 0.0
      %589 = vmatpush1.msra.mxu0 %v566
      %590 = vmatprep.subr.mxu0 0.0
      %591 = vmatpush1.msra.mxu0 %v565
      %592 = vmatprep.subr.mxu0 0.0
      %593 = vmatpush1.msra.mxu0 %v564
      %594 = vmatprep.subr.mxu0 0.0
      %595 = vmatpush1.msra.mxu0 %v563
      %596 = vmatprep.subr.mxu0 0.0
      %597 = vmatpush1.msra.mxu0 %v562
      %598 = vmatprep.subr.mxu0 0.0
      %599 = vmatpush1.msra.mxu0 %v561
      %600 = vmatprep.subr.mxu0 0.0
      %601 = vmatpush1.msra.mxu0 %v560
      %602 = vmatprep.subr.mxu0 0.0
      %603 = vmatpush1.msra.mxu0 %v559
      %604 = vmatprep.subr.mxu0 0.0
      %605 = vmatpush1.msra.mxu0 %v558
      %606 = vmatprep.subr.mxu0 0.0
      %607 = vmatpush2.msra.mxu0 0.0
      %608 = vmatprep.subr.mxu0 0.0
      %609 = vmatpush2.msra.mxu0 0.0
      %610 = vmatprep.subr.mxu0 0.0
      %611 = vmatpush2.msra.mxu0 0.0
      %612 = vmatprep.subr.mxu0 0.0
      %613 = vmatpush2.msra.mxu0 0.0
      %614 = vmatprep.subr.mxu0 0.0
      %615 = vmatpush2.msra.mxu0 0.0
      %616 = vmatprep.subr.mxu0 0.0
      %617 = vmatpush2.msra.mxu0 0.0
      %618 = vmatprep.subr.mxu0 0.0
      %619 = vmatpush2.msra.mxu0 0.0
      %620 = vmatprep.subr.mxu0 0.0
      %621 = vmatpush2.msra.mxu0 0.0
      %622 = vmatprep.subr.mxu0 0.0
      %623 = vmatpush2.msra.mxu0 0.0
      %624 = vmatprep.subr.mxu0 0.0
      %625 = vmatpush2.msra.mxu0 0.0
      %626 = vmatprep.subr.mxu0 0.0
      %627 = vmatpush2.msra.mxu0 0.0
      %628 = vmatprep.subr.mxu0 0.0
      %629 = vmatpush2.msra.mxu0 0.0
      %630 = vmatprep.subr.mxu0 0.0
      %631 = vmatpush2.msra.mxu0 0.0
      %632 = vmatprep.subr.mxu0 0.0
      %633 = vmatpush2.msra.mxu0 0.0
      %634 = vmatprep.subr.mxu0 0.0
      %635 = vmatpush2.msra.mxu0 0.0
      %636 = vmatprep.subr.mxu0 0.0
      %637 = vmatpush2.msra.mxu0 0.0
      %638 = vmatprep.mubr.f32.mxu0 0.0
      %639 = vmatmul.mubr.f32.gmra.mxu0 %v542
      %v640 = vpop.f32.mrf.mxu0
      %v641 = vadd.f32 0.0, %v640
      %v642 = vpop.f32.mrf.mxu0
      %643 = vmatprep.mubr.f32.mxu0 0.0
      %644 = vmatmul.mubr.f32.gmra.mxu0 %v543
      %v645 = vpop.f32.mrf.mxu0
      %v646 = vadd.f32 0.0, %v645
      %v647 = vpop.f32.mrf.mxu0
      %648 = vmatprep.mubr.f32.mxu0 0.0
      %649 = vmatmul.mubr.f32.gmra.mxu0 %v544
      %v650 = vpop.f32.mrf.mxu0
      %v651 = vadd.f32 0.0, %v650
      %v652 = vpop.f32.mrf.mxu0
      %653 = vmatprep.mubr.f32.mxu0 0.0
      %654 = vmatmul.mubr.f32.gmra.mxu0 %v545
      %v655 = vpop.f32.mrf.mxu0
      %v656 = vadd.f32 0.0, %v655
      %v657 = vpop.f32.mrf.mxu0
      %658 = vmatprep.mubr.f32.mxu0 0.0
      %659 = vmatmul.mubr.f32.gmra.mxu0 %v546
      %v660 = vpop.f32.mrf.mxu0
      %v661 = vadd.f32 0.0, %v660
      %v662 = vpop.f32.mrf.mxu0
      %663 = vmatprep.mubr.f32.mxu0 0.0
      %664 = vmatmul.mubr.f32.gmra.mxu0 %v547
      %v665 = vpop.f32.mrf.mxu0
      %v666 = vadd.f32 0.0, %v665
      %v667 = vpop.f32.mrf.mxu0
      %668 = vmatprep.mubr.f32.mxu0 0.0
      %669 = vmatmul.mubr.f32.gmra.mxu0 %v548
      %v670 = vpop.f32.mrf.mxu0
      %v671 = vadd.f32 0.0, %v670
      %v672 = vpop.f32.mrf.mxu0
      %673 = vmatprep.mubr.f32.mxu0 0.0
      %674 = vmatmul.mubr.f32.gmra.mxu0 %v549
      %v675 = vpop.f32.mrf.mxu0
      %v676 = vadd.f32 0.0, %v675
      %v677 = vpop.f32.mrf.mxu0
      %678 = vmatprep.mubr.f32.mxu0 0.0
      %679 = vmatmul.mubr.f32.gmra.mxu0 %v550
      %v680 = vpop.f32.mrf.mxu0
      %v681 = vadd.f32 0.0, %v680
      %v682 = vpop.f32.mrf.mxu0
      %683 = vmatprep.mubr.f32.mxu0 0.0
      %684 = vmatmul.mubr.f32.gmra.mxu0 %v551
      %v685 = vpop.f32.mrf.mxu0
      %v686 = vadd.f32 0.0, %v685
      %v687 = vpop.f32.mrf.mxu0
      %688 = vmatprep.mubr.f32.mxu0 0.0
      %689 = vmatmul.mubr.f32.gmra.mxu0 %v552
      %v690 = vpop.f32.mrf.mxu0
      %v691 = vadd.f32 0.0, %v690
      %v692 = vpop.f32.mrf.mxu0
      %693 = vmatprep.mubr.f32.mxu0 0.0
      %694 = vmatmul.mubr.f32.gmra.mxu0 %v553
      %v695 = vpop.f32.mrf.mxu0
      %v696 = vadd.f32 0.0, %v695
      %v697 = vpop.f32.mrf.mxu0
      %698 = vmatprep.mubr.f32.mxu0 0.0
      %699 = vmatmul.mubr.f32.gmra.mxu0 %v554
      %v700 = vpop.f32.mrf.mxu0
      %v701 = vadd.f32 0.0, %v700
      %v702 = vpop.f32.mrf.mxu0
      %703 = vmatprep.mubr.f32.mxu0 0.0
      %704 = vmatmul.mubr.f32.gmra.mxu0 %v555
      %v705 = vpop.f32.mrf.mxu0
      %v706 = vadd.f32 0.0, %v705
      %v707 = vpop.f32.mrf.mxu0
      %708 = vmatprep.mubr.f32.mxu0 0.0
      %709 = vmatmul.mubr.f32.gmra.mxu0 %v556
      %v710 = vpop.f32.mrf.mxu0
      %v711 = vadd.f32 0.0, %v710
      %v712 = vpop.f32.mrf.mxu0
      %713 = vmatprep.mubr.f32.mxu0 0.0
      %714 = vmatmul.mubr.f32.gmra.mxu0 %v557
      %v715 = vpop.f32.mrf.mxu0
      %v716 = vadd.f32 0.0, %v715
      %v717 = vpop.f32.mrf.mxu0
      %718 = vdwg.mxu0
      %v719 = vld [vmem:[%s7] sm:$0xff]
      %v720 = vld [vmem:[%s7 + $0x8] sm:$0xff]
      %v721 = vld [vmem:[%s7 + $0x10] sm:$0xff]
      %v722 = vld [vmem:[%s7 + $0x18] sm:$0xff]
      %v723 = vld [vmem:[%s7 + $0x20] sm:$0xff]
      %v724 = vld [vmem:[%s7 + $0x28] sm:$0xff]
      %v725 = vld [vmem:[%s7 + $0x30] sm:$0xff]
      %v726 = vld [vmem:[%s7 + $0x38] sm:$0xff]
      %v727 = vld [vmem:[%s7 + $0x40] sm:$0xff]
      %v728 = vld [vmem:[%s7 + $0x48] sm:$0xff]
      %v729 = vld [vmem:[%s7 + $0x50] sm:$0xff]
      %v730 = vld [vmem:[%s7 + $0x58] sm:$0xff]
      %v731 = vld [vmem:[%s7 + $0x60] sm:$0xff]
      %v732 = vld [vmem:[%s7 + $0x68] sm:$0xff]
      %v733 = vld [vmem:[%s7 + $0x70] sm:$0xff]
      %v734 = vld [vmem:[%s7 + $0x78] sm:$0xff]
      %736 = vset.pattern.permute.xlu0 0
      %737 = vperm.xlu0 %736, %v719
      %v738 = vpop.permute.xlu0 %737
      %741 = vset.pattern.permute.xlu0 0
      %742 = vperm.xlu0 %741, %v720
      %v743 = vpop.permute.xlu0 %742
      %746 = vset.pattern.permute.xlu0 0
      %747 = vperm.xlu0 %746, %v721
      %v748 = vpop.permute.xlu0 %747
      %751 = vset.pattern.permute.xlu0 0
      %752 = vperm.xlu0 %751, %v722
      %v753 = vpop.permute.xlu0 %752
      %756 = vset.pattern.permute.xlu0 0
      %757 = vperm.xlu0 %756, %v723
      %v758 = vpop.permute.xlu0 %757
      %761 = vset.pattern.permute.xlu0 0
      %762 = vperm.xlu0 %761, %v724
      %v763 = vpop.permute.xlu0 %762
      %766 = vset.pattern.permute.xlu0 0
      %767 = vperm.xlu0 %766, %v725
      %v768 = vpop.permute.xlu0 %767
      %771 = vset.pattern.permute.xlu0 0
      %772 = vperm.xlu0 %771, %v726
      %v773 = vpop.permute.xlu0 %772
      %776 = vset.pattern.permute.xlu0 0
      %777 = vperm.xlu0 %776, %v727
      %v778 = vpop.permute.xlu0 %777
      %781 = vset.pattern.permute.xlu0 0
      %782 = vperm.xlu0 %781, %v728
      %v783 = vpop.permute.xlu0 %782
      %786 = vset.pattern.permute.xlu0 0
      %787 = vperm.xlu0 %786, %v729
      %v788 = vpop.permute.xlu0 %787
      %791 = vset.pattern.permute.xlu0 0
      %792 = vperm.xlu0 %791, %v730
      %v793 = vpop.permute.xlu0 %792
      %796 = vset.pattern.permute.xlu0 0
      %797 = vperm.xlu0 %796, %v731
      %v798 = vpop.permute.xlu0 %797
      %801 = vset.pattern.permute.xlu0 0
      %802 = vperm.xlu0 %801, %v732
      %v803 = vpop.permute.xlu0 %802
      %806 = vset.pattern.permute.xlu0 0
      %807 = vperm.xlu0 %806, %v733
      %v808 = vpop.permute.xlu0 %807
      %811 = vset.pattern.permute.xlu0 0
      %812 = vperm.xlu0 %811, %v734
      %v813 = vpop.permute.xlu0 %812
      %v815 = vmul.f32 %v641, %v738
      %v816 = vmul.f32 %v646, %v743
      %v817 = vmul.f32 %v651, %v748
      %v818 = vmul.f32 %v656, %v753
      %v819 = vmul.f32 %v661, %v758
      %v820 = vmul.f32 %v666, %v763
      %v821 = vmul.f32 %v671, %v768
      %v822 = vmul.f32 %v676, %v773
      %v823 = vmul.f32 %v681, %v778
      %v824 = vmul.f32 %v686, %v783
      %v825 = vmul.f32 %v691, %v788
      %v826 = vmul.f32 %v696, %v793
      %v827 = vmul.f32 %v701, %v798
      %v828 = vmul.f32 %v706, %v803
      %v829 = vmul.f32 %v711, %v808
      %v830 = vmul.f32 %v716, %v813
      %v831 = vld [vmem:[%s6] sm:$0x1]
      %v833 = vlaneseq
      %v834 = vshrl.u32 %v833, 7
      %v835 = vsub.s32 0, %v834
      %v836 = vrot.slane %v831, %v835
      %v838 = vadd.f32 %v815, %v836
      %v839 = vadd.f32 %v816, %v836
      %v840 = vadd.f32 %v817, %v836
      %v841 = vadd.f32 %v818, %v836
      %v842 = vadd.f32 %v819, %v836
      %v843 = vadd.f32 %v820, %v836
      %v844 = vadd.f32 %v821, %v836
      %v845 = vadd.f32 %v822, %v836
      %v846 = vadd.f32 %v823, %v836
      %v847 = vadd.f32 %v824, %v836
      %v848 = vadd.f32 %v825, %v836
      %v849 = vadd.f32 %v826, %v836
      %v850 = vadd.f32 %v827, %v836
      %v851 = vadd.f32 %v828, %v836
      %v852 = vadd.f32 %v829, %v836
      %v853 = vadd.f32 %v830, %v836
      %v854 = vmax.f32 %v838, 0.0
      %v855 = vmax.f32 %v839, 0.0
      %v856 = vmax.f32 %v840, 0.0
      %v857 = vmax.f32 %v841, 0.0
      %v858 = vmax.f32 %v842, 0.0
      %v859 = vmax.f32 %v843, 0.0
      %v860 = vmax.f32 %v844, 0.0
      %v861 = vmax.f32 %v845, 0.0
      %v862 = vmax.f32 %v846, 0.0
      %v863 = vmax.f32 %v847, 0.0
      %v864 = vmax.f32 %v848, 0.0
      %v865 = vmax.f32 %v849, 0.0
      %v866 = vmax.f32 %v850, 0.0
      %v867 = vmax.f32 %v851, 0.0
      %v868 = vmax.f32 %v852, 0.0
      %v869 = vmax.f32 %v853, 0.0
      %s870 = smul.u32 0, 128
      %s871 = scalar_lea.vmem [#allocation3], %s870
      %v872 = vld [vmem:[%s871] sm:$0xff]
      %v873 = vld [vmem:[%s871 + $0x8] sm:$0xff]
      %v874 = vld [vmem:[%s871 + $0x10] sm:$0xff]
      %v875 = vld [vmem:[%s871 + $0x18] sm:$0xff]
      %v876 = vld [vmem:[%s871 + $0x20] sm:$0xff]
      %v877 = vld [vmem:[%s871 + $0x28] sm:$0xff]
      %v878 = vld [vmem:[%s871 + $0x30] sm:$0xff]
      %v879 = vld [vmem:[%s871 + $0x38] sm:$0xff]
      %v880 = vld [vmem:[%s871 + $0x40] sm:$0xff]
      %v881 = vld [vmem:[%s871 + $0x48] sm:$0xff]
      %v882 = vld [vmem:[%s871 + $0x50] sm:$0xff]
      %v883 = vld [vmem:[%s871 + $0x58] sm:$0xff]
      %v884 = vld [vmem:[%s871 + $0x60] sm:$0xff]
      %v885 = vld [vmem:[%s871 + $0x68] sm:$0xff]
      %v886 = vld [vmem:[%s871 + $0x70] sm:$0xff]
      %v887 = vld [vmem:[%s871 + $0x78] sm:$0xff]
      %v888 = vadd.f32 %v854, %v872
      %v889 = vadd.f32 %v855, %v873
      %v890 = vadd.f32 %v856, %v874
      %v891 = vadd.f32 %v857, %v875
      %v892 = vadd.f32 %v858, %v876
      %v893 = vadd.f32 %v859, %v877
      %v894 = vadd.f32 %v860, %v878
      %v895 = vadd.f32 %v861, %v879
      %v896 = vadd.f32 %v862, %v880
      %v897 = vadd.f32 %v863, %v881
      %v898 = vadd.f32 %v864, %v882
      %v899 = vadd.f32 %v865, %v883
      %v900 = vadd.f32 %v866, %v884
      %v901 = vadd.f32 %v867, %v885
      %v902 = vadd.f32 %v868, %v886
      %v903 = vadd.f32 %v869, %v887
      %904 = vst [vmem:[#allocation9] sm:$0xff] %v888
      %905 = vst [vmem:[#allocation9 + $0x8] sm:$0xff] %v889
      %906 = vst [vmem:[#allocation9 + $0x10] sm:$0xff] %v890
      %907 = vst [vmem:[#allocation9 + $0x18] sm:$0xff] %v891
      %908 = vst [vmem:[#allocation9 + $0x20] sm:$0xff] %v892
      %909 = vst [vmem:[#allocation9 + $0x28] sm:$0xff] %v893
      %910 = vst [vmem:[#allocation9 + $0x30] sm:$0xff] %v894
      %911 = vst [vmem:[#allocation9 + $0x38] sm:$0xff] %v895
      %912 = vst [vmem:[#allocation9 + $0x40] sm:$0xff] %v896
      %913 = vst [vmem:[#allocation9 + $0x48] sm:$0xff] %v897
      %914 = vst [vmem:[#allocation9 + $0x50] sm:$0xff] %v898
      %915 = vst [vmem:[#allocation9 + $0x58] sm:$0xff] %v899
      %916 = vst [vmem:[#allocation9 + $0x60] sm:$0xff] %v900
      %917 = vst [vmem:[#allocation9 + $0x68] sm:$0xff] %v901
      %918 = vst [vmem:[#allocation9 + $0x70] sm:$0xff] %v902
      %919 = vst [vmem:[#allocation9 + $0x78] sm:$0xff] %v903
    $region53: #{tpu_custom_call.1} parent=1 // pred_fallthru
      _
    // Predicated region
    $region54: #{tpu_custom_call.1} parent=1 // pred_check
      _
    $region55: #{tpu_custom_call.1} parent=1 // pred_check_branch
      %921 = sbr.rel (0) target = $region57
    $region56: #{tpu_custom_call.1} parent=1 // pred_region
      %s923 = ssub.s32 2048, 2048
      %924 = vsyncadd [#allocation5], %s923
      %s925 = sshll.u32 [#allocation9], 4
      %s926 = int_to_ptr.vmem [resolvable:$true] %s925
      %931 = dma.vmem_to_hbm [thread:$0]  %s926, 2048, %s8, [#allocation5], 128, 128, 8
    $region57: #{tpu_custom_call.1} parent=1 // pred_fallthru
      _
    // Predicated region
    $region58: #{tpu_custom_call.1} parent=1 // pred_check
      _
    $region59: #{tpu_custom_call.1} parent=1 // pred_check_branch
      %933 = sbr.rel (0) target = $region61
    $region60: #{tpu_custom_call.1} parent=1 // pred_region
      %934 = dma.done [#allocation5], 2048
    $region61: #{tpu_custom_call.1} parent=1 // pred_fallthru
      _
    %935 = vsyncpa [#allocation4], 1
    %936 = vsyncpa [#allocation7], 1
    %937 = vsyncpa [#allocation5], 1

// kernel: tpu_custom_call.1
$region0: #{tpu_custom_call.1}
  #allocation0 [shape = 'u32[]', space=smem, size = 0x4, offset = 0x4, fixed_abs, tag = 'smem constant byte address 0x4 - core index']
  #allocation1 [shape = 'u32[144,128]{1,0:T(1,128)}', space=vmem, size = 0x12000, scoped, tag = 'internal scratch']
  #allocation2 [shape = 'f32[1]{0:T(128)S(6)}', space=smem, size = 0x200, scoped, tag = 'scoped memory for tpu_custom_call.1']
  %s0 = inlined_call_operand.<no memory space> [shape: f32[1], index: 0, kind: input, shape index: {}]
  %s1 = inlined_call_operand.vmem [shape: f32[128,128], index: 1, kind: input, shape index: {}]
  %s2 = inlined_call_operand.hbm [shape: f32[128,128], index: 2, kind: input, shape index: {}]
  %s3 = inlined_call_operand.hbm [shape: f32[128,128], index: 3, kind: input, shape index: {}]
  %s4 = inlined_call_operand.vmem [shape: f32[1,128], index: 4, kind: input, shape index: {}]
  %s5 = inlined_call_operand.hbm [shape: f32[128,128], index: 5, kind: input, shape index: {}]
  %s6 = inlined_call_operand.vmem [shape: f32[1,128], index: 6, kind: input, shape index: {}]
  %s7 = inlined_call_operand.vmem [shape: f32[128,1], index: 7, kind: input, shape index: {}]
  %s8 = inlined_call_operand.hbm [shape: f32[128,128], index: 8, kind: output, shape index: {}]
  %s9 = sld [smem:[#allocation0]]
  $region62: #{tpu_custom_call.1} parent=0
    _
  %s11 = ssub.s32 1, %s9
  %s12 = scalar_select 0, %s11, %s9
  %13 = sst [smem:[#allocation2]] %s0
  $region1: #{tpu_custom_call.1} parent=0
    #allocation3 [shape = 'u8[65536]{0}', space=vmem, size = 0x10000, scoped, tag = 'input window, operand 2, single buffered']
    #allocation4 [shape = 's32[1]{0}', space=sflag, size = 0x4, scoped, tag = 'scoped memory for tpu_custom_call.1']
    #allocation5 [shape = 's32[1]{0}', space=sflag, size = 0x4, scoped, tag = 'scoped memory for tpu_custom_call.1']
    #allocation6 [shape = 'u8[65536]{0}', space=vmem, size = 0x10000, scoped, tag = 'input window, operand 3, single buffered']
    #allocation7 [shape = 's32[1]{0}', space=sflag, size = 0x4, scoped, tag = 'scoped memory for tpu_custom_call.1']
    #allocation8 [shape = 'u8[65536]{0}', space=vmem, size = 0x10000, scoped, tag = 'input window, operand 5, single buffered']
    #allocation9 [shape = 'u8[65536]{0}', space=vmem, size = 0x10000, scoped, tag = 'output window, operand 0, single buffered']
    %14 = vsyncpa [#allocation4], 0
    %15 = vsyncpa [#allocation7], 0
    %16 = vsyncpa [#allocation5], 0
    // Predicated region
    $region2: #{tpu_custom_call.1} parent=1 // pred_check
      _
    $region3: #{tpu_custom_call.1} parent=1 // pred_check_branch
      %18 = sbr.rel (0) target = $region5
    $region4: #{tpu_custom_call.1} parent=1 // pred_region
      _
    $region5: #{tpu_custom_call.1} parent=1 // pred_fallthru
      _
    // Predicated region
    $region6: #{tpu_custom_call.1} parent=1 // pred_check
      _
    $region7: #{tpu_custom_call.1} parent=1 // pred_check_branch
      %20 = sbr.rel (0) target = $region9
    $region8: #{tpu_custom_call.1} parent=1 // pred_region
      _
    $region9: #{tpu_custom_call.1} parent=1 // pred_fallthru
      _
    // Predicated region
    $region10: #{tpu_custom_call.1} parent=1 // pred_check
      _
    $region11: #{tpu_custom_call.1} parent=1 // pred_check_branch
      %22 = sbr.rel (0) target = $region13
    $region12: #{tpu_custom_call.1} parent=1 // pred_region
      %s24 = ssub.s32 2048, 2048
      %25 = vsyncadd [#allocation4], %s24
      %s26 = sshll.u32 [#allocation3], 4
      %s27 = int_to_ptr.vmem [resolvable:$true] %s26
      %32 = dma.hbm_to_vmem [thread:$0]  %s2, 2048, %s27, [#allocation4], 128, 128, 8
    $region13: #{tpu_custom_call.1} parent=1 // pred_fallthru
      _
    // Predicated region
    $region14: #{tpu_custom_call.1} parent=1 // pred_check
      _
    $region15: #{tpu_custom_call.1} parent=1 // pred_check_branch
      %34 = sbr.rel (0) target = $region17
    $region16: #{tpu_custom_call.1} parent=1 // pred_region
      %s36 = ssub.s32 2048, 2048
      %37 = vsyncadd [#allocation7], %s36
      %s38 = sshll.u32 [#allocation6], 4
      %s39 = int_to_ptr.vmem [resolvable:$true] %s38
      %44 = dma.hbm_to_vmem [thread:$0]  %s3, 2048, %s39, [#allocation7], 128, 128, 8
    $region17: #{tpu_custom_call.1} parent=1 // pred_fallthru
      _
    // Predicated region
    $region18: #{tpu_custom_call.1} parent=1 // pred_check
      _
    $region19: #{tpu_custom_call.1} parent=1 // pred_check_branch
      %46 = sbr.rel (0) target = $region21
    $region20: #{tpu_custom_call.1} parent=1 // pred_region
      _
    $region21: #{tpu_custom_call.1} parent=1 // pred_fallthru
      _
    // Predicated region
    $region22: #{tpu_custom_call.1} parent=1 // pred_check
      _
    $region23: #{tpu_custom_call.1} parent=1 // pred_check_branch
      %48 = sbr.rel (0) target = $region25
    $region24: #{tpu_custom_call.1} parent=1 // pred_region
      %s50 = ssub.s32 2048, 2048
      %51 = vsyncadd [#allocation7], %s50
      %s52 = sshll.u32 [#allocation8], 4
      %s53 = int_to_ptr.vmem [resolvable:$true] %s52
      %58 = dma.hbm_to_vmem [thread:$0]  %s5, 2048, %s53, [#allocation7], 128, 128, 8
    $region25: #{tpu_custom_call.1} parent=1 // pred_fallthru
      _
    // Predicated region
    $region26: #{tpu_custom_call.1} parent=1 // pred_check
      _
    $region27: #{tpu_custom_call.1} parent=1 // pred_check_branch
      %60 = sbr.rel (0) target = $region29
    $region28: #{tpu_custom_call.1} parent=1 // pred_region
      _
    $region29: #{tpu_custom_call.1} parent=1 // pred_fallthru
      _
    // Predicated region
    $region30: #{tpu_custom_call.1} parent=1 // pred_check
      _
    $region31: #{tpu_custom_call.1} parent=1 // pred_check_branch
      %62 = sbr.rel (0) target = $region33
    $region32: #{tpu_custom_call.1} parent=1 // pred_region
      _
    $region33: #{tpu_custom_call.1} parent=1 // pred_fallthru
      _
    // Predicated region
    $region34: #{tpu_custom_call.1} parent=1 // pred_check
      _
    $region35: #{tpu_custom_call.1} parent=1 // pred_check_branch
      %64 = sbr.rel (0) target = $region37
    $region36: #{tpu_custom_call.1} parent=1 // pred_region
      %65 = dma.done [#allocation4], 2048
    $region37: #{tpu_custom_call.1} parent=1 // pred_fallthru
      _
    // Predicated region
    $region38: #{tpu_custom_call.1} parent=1 // pred_check
      _
    $region39: #{tpu_custom_call.1} parent=1 // pred_check_branch
      %67 = sbr.rel (0) target = $region41
    $region40: #{tpu_custom_call.1} parent=1 // pred_region
      %68 = dma.done [#allocation7], 2048
    $region41: #{tpu_custom_call.1} parent=1 // pred_fallthru
      _
    // Predicated region
    $region42: #{tpu_custom_call.1} parent=1 // pred_check
      _
    $region43: #{tpu_custom_call.1} parent=1 // pred_check_branch
      %70 = sbr.rel (0) target = $region45
    $region44: #{tpu_custom_call.1} parent=1 // pred_region
      %71 = dma.done [#allocation7], 2048
    $region45: #{tpu_custom_call.1} parent=1 // pred_fallthru
      _
    %p72 = scmp.eq.s32.totalorder 0, 0
    // Predicated region
    $region46: #{tpu_custom_call.1} parent=1 // pred_check
      %p73 = pneg %p72
    $region47: #{tpu_custom_call.1} parent=1 // pred_check_branch
      %75 = sbr.rel (%p73) target = $region49
    $region48: #{tpu_custom_call.1} parent=1 // pred_region
      %s76 = sld [smem:[#allocation2]]
      %s77 = smul.u32 0, 128
      %s78 = scalar_lea.vmem [#allocation3], %s77
      %v79 = vld [vmem:[%s78] sm:$0xff]
      %v80 = vld [vmem:[%s78 + $0x8] sm:$0xff]
      %v81 = vld [vmem:[%s78 + $0x10] sm:$0xff]
      %v82 = vld [vmem:[%s78 + $0x18] sm:$0xff]
      %v83 = vld [vmem:[%s78 + $0x20] sm:$0xff]
      %v84 = vld [vmem:[%s78 + $0x28] sm:$0xff]
      %v85 = vld [vmem:[%s78 + $0x30] sm:$0xff]
      %v86 = vld [vmem:[%s78 + $0x38] sm:$0xff]
      %v87 = vld [vmem:[%s78 + $0x40] sm:$0xff]
      %v88 = vld [vmem:[%s78 + $0x48] sm:$0xff]
      %v89 = vld [vmem:[%s78 + $0x50] sm:$0xff]
      %v90 = vld [vmem:[%s78 + $0x58] sm:$0xff]
      %v91 = vld [vmem:[%s78 + $0x60] sm:$0xff]
      %v92 = vld [vmem:[%s78 + $0x68] sm:$0xff]
      %v93 = vld [vmem:[%s78 + $0x70] sm:$0xff]
      %v94 = vld [vmem:[%s78 + $0x78] sm:$0xff]
      %v95 = vstv %s76
      %v96 = vmul.f32 %v95, %v79
      %v97 = vmul.f32 %v95, %v80
      %v98 = vmul.f32 %v95, %v81
      %v99 = vmul.f32 %v95, %v82
      %v100 = vmul.f32 %v95, %v83
      %v101 = vmul.f32 %v95, %v84
      %v102 = vmul.f32 %v95, %v85
      %v103 = vmul.f32 %v95, %v86
      %v104 = vmul.f32 %v95, %v87
      %v105 = vmul.f32 %v95, %v88
      %v106 = vmul.f32 %v95, %v89
      %v107 = vmul.f32 %v95, %v90
      %v108 = vmul.f32 %v95, %v91
      %v109 = vmul.f32 %v95, %v92
      %v110 = vmul.f32 %v95, %v93
      %v111 = vmul.f32 %v95, %v94
      %112 = vst [vmem:[#allocation9] sm:$0xff] %v96
      %113 = vst [vmem:[#allocation9 + $0x8] sm:$0xff] %v97
      %114 = vst [vmem:[#allocation9 + $0x10] sm:$0xff] %v98
      %115 = vst [vmem:[#allocation9 + $0x18] sm:$0xff] %v99
      %116 = vst [vmem:[#allocation9 + $0x20] sm:$0xff] %v100
      %117 = vst [vmem:[#allocation9 + $0x28] sm:$0xff] %v101
      %118 = vst [vmem:[#allocation9 + $0x30] sm:$0xff] %v102
      %119 = vst [vmem:[#allocation9 + $0x38] sm:$0xff] %v103
      %120 = vst [vmem:[#allocation9 + $0x40] sm:$0xff] %v104
      %121 = vst [vmem:[#allocation9 + $0x48] sm:$0xff] %v105
      %122 = vst [vmem:[#allocation9 + $0x50] sm:$0xff] %v106
      %123 = vst [vmem:[#allocation9 + $0x58] sm:$0xff] %v107
      %124 = vst [vmem:[#allocation9 + $0x60] sm:$0xff] %v108
      %125 = vst [vmem:[#allocation9 + $0x68] sm:$0xff] %v109
      %126 = vst [vmem:[#allocation9 + $0x70] sm:$0xff] %v110
      %127 = vst [vmem:[#allocation9 + $0x78] sm:$0xff] %v111
    $region49: #{tpu_custom_call.1} parent=1 // pred_fallthru
      _
    %v128 = vld [vmem:[#allocation9] sm:$0xff]
    %v129 = vld [vmem:[#allocation9 + $0x8] sm:$0xff]
    %v130 = vld [vmem:[#allocation9 + $0x10] sm:$0xff]
    %v131 = vld [vmem:[#allocation9 + $0x18] sm:$0xff]
    %v132 = vld [vmem:[#allocation9 + $0x20] sm:$0xff]
    %v133 = vld [vmem:[#allocation9 + $0x28] sm:$0xff]
    %v134 = vld [vmem:[#allocation9 + $0x30] sm:$0xff]
    %v135 = vld [vmem:[#allocation9 + $0x38] sm:$0xff]
    %v136 = vld [vmem:[#allocation9 + $0x40] sm:$0xff]
    %v137 = vld [vmem:[#allocation9 + $0x48] sm:$0xff]
    %v138 = vld [vmem:[#allocation9 + $0x50] sm:$0xff]
    %v139 = vld [vmem:[#allocation9 + $0x58] sm:$0xff]
    %v140 = vld [vmem:[#allocation9 + $0x60] sm:$0xff]
    %v141 = vld [vmem:[#allocation9 + $0x68] sm:$0xff]
    %v142 = vld [vmem:[#allocation9 + $0x70] sm:$0xff]
    %v143 = vld [vmem:[#allocation9 + $0x78] sm:$0xff]
    %v144 = vld [vmem:[%s1] sm:$0xff]
    %v145 = vld [vmem:[%s1 + $0x8] sm:$0xff]
    %v146 = vld [vmem:[%s1 + $0x10] sm:$0xff]
    %v147 = vld [vmem:[%s1 + $0x18] sm:$0xff]
    %v148 = vld [vmem:[%s1 + $0x20] sm:$0xff]
    %v149 = vld [vmem:[%s1 + $0x28] sm:$0xff]
    %v150 = vld [vmem:[%s1 + $0x30] sm:$0xff]
    %v151 = vld [vmem:[%s1 + $0x38] sm:$0xff]
    %v152 = vld [vmem:[%s1 + $0x40] sm:$0xff]
    %v153 = vld [vmem:[%s1 + $0x48] sm:$0xff]
    %v154 = vld [vmem:[%s1 + $0x50] sm:$0xff]
    %v155 = vld [vmem:[%s1 + $0x58] sm:$0xff]
    %v156 = vld [vmem:[%s1 + $0x60] sm:$0xff]
    %v157 = vld [vmem:[%s1 + $0x68] sm:$0xff]
    %v158 = vld [vmem:[%s1 + $0x70] sm:$0xff]
    %v159 = vld [vmem:[%s1 + $0x78] sm:$0xff]
    %s160 = smul.u32 0, 128
    %s161 = scalar_lea.vmem [#allocation3], %s160
    %v162 = vld [vmem:[%s161] sm:$0xff]
    %v163 = vld [vmem:[%s161 + $0x8] sm:$0xff]
    %v164 = vld [vmem:[%s161 + $0x10] sm:$0xff]
    %v165 = vld [vmem:[%s161 + $0x18] sm:$0xff]
    %v166 = vld [vmem:[%s161 + $0x20] sm:$0xff]
    %v167 = vld [vmem:[%s161 + $0x28] sm:$0xff]
    %v168 = vld [vmem:[%s161 + $0x30] sm:$0xff]
    %v169 = vld [vmem:[%s161 + $0x38] sm:$0xff]
    %v170 = vld [vmem:[%s161 + $0x40] sm:$0xff]
    %v171 = vld [vmem:[%s161 + $0x48] sm:$0xff]
    %v172 = vld [vmem:[%s161 + $0x50] sm:$0xff]
    %v173 = vld [vmem:[%s161 + $0x58] sm:$0xff]
    %v174 = vld [vmem:[%s161 + $0x60] sm:$0xff]
    %v175 = vld [vmem:[%s161 + $0x68] sm:$0xff]
    %v176 = vld [vmem:[%s161 + $0x70] sm:$0xff]
    %v177 = vld [vmem:[%s161 + $0x78] sm:$0xff]
    %178 = vmatprep.subr.mxu0 0.0
    %179 = vmatpush1.msra.mxu0 %v177
    %180 = vmatprep.subr.mxu0 0.0
    %181 = vmatpush1.msra.mxu0 %v176
    %182 = vmatprep.subr.mxu0 0.0
    %183 = vmatpush1.msra.mxu0 %v175
    %184 = vmatprep.subr.mxu0 0.0
    %185 = vmatpush1.msra.mxu0 %v174
    %186 = vmatprep.subr.mxu0 0.0
    %187 = vmatpush1.msra.mxu0 %v173
    %188 = vmatprep.subr.mxu0 0.0
    %189 = vmatpush1.msra.mxu0 %v172
    %190 = vmatprep.subr.mxu0 0.0
    %191 = vmatpush1.msra.mxu0 %v171
    %192 = vmatprep.subr.mxu0 0.0
    %193 = vmatpush1.msra.mxu0 %v170
    %194 = vmatprep.subr.mxu0 0.0
    %195 = vmatpush1.msra.mxu0 %v169
    %196 = vmatprep.subr.mxu0 0.0
    %197 = vmatpush1.msra.mxu0 %v168
    %198 = vmatprep.subr.mxu0 0.0
    %199 = vmatpush1.msra.mxu0 %v167
    %200 = vmatprep.subr.mxu0 0.0
    %201 = vmatpush1.msra.mxu0 %v166
    %202 = vmatprep.subr.mxu0 0.0
    %203 = vmatpush1.msra.mxu0 %v165
    %204 = vmatprep.subr.mxu0 0.0
    %205 = vmatpush1.msra.mxu0 %v164
    %206 = vmatprep.subr.mxu0 0.0
    %207 = vmatpush1.msra.mxu0 %v163
    %208 = vmatprep.subr.mxu0 0.0
    %209 = vmatpush1.msra.mxu0 %v162
    %210 = vmatprep.subr.mxu0 0.0
    %211 = vmatpush2.msra.mxu0 0.0
    %212 = vmatprep.subr.mxu0 0.0
    %213 = vmatpush2.msra.mxu0 0.0
    %214 = vmatprep.subr.mxu0 0.0
    %215 = vmatpush2.msra.mxu0 0.0
    %216 = vmatprep.subr.mxu0 0.0
    %217 = vmatpush2.msra.mxu0 0.0
    %218 = vmatprep.subr.mxu0 0.0
    %219 = vmatpush2.msra.mxu0 0.0
    %220 = vmatprep.subr.mxu0 0.0
    %221 = vmatpush2.msra.mxu0 0.0
    %222 = vmatprep.subr.mxu0 0.0
    %223 = vmatpush2.msra.mxu0 0.0
    %224 = vmatprep.subr.mxu0 0.0
    %225 = vmatpush2.msra.mxu0 0.0
    %226 = vmatprep.subr.mxu0 0.0
    %227 = vmatpush2.msra.mxu0 0.0
    %228 = vmatprep.subr.mxu0 0.0
    %229 = vmatpush2.msra.mxu0 0.0
    %230 = vmatprep.subr.mxu0 0.0
    %231 = vmatpush2.msra.mxu0 0.0
    %232 = vmatprep.subr.mxu0 0.0
    %233 = vmatpush2.msra.mxu0 0.0
    %234 = vmatprep.subr.mxu0 0.0
    %235 = vmatpush2.msra.mxu0 0.0
    %236 = vmatprep.subr.mxu0 0.0
    %237 = vmatpush2.msra.mxu0 0.0
    %238 = vmatprep.subr.mxu0 0.0
    %239 = vmatpush2.msra.mxu0 0.0
    %240 = vmatprep.subr.mxu0 0.0
    %241 = vmatpush2.msra.mxu0 0.0
    %242 = vmatprep.mubr.f32.mxu0 0.0
    %243 = vmatmul.mubr.f32.gmra.mxu0 %v144
    %v244 = vpop.f32.mrf.mxu0
    %v245 = vadd.f32 0.0, %v244
    %v246 = vpop.f32.mrf.mxu0
    %247 = vmatprep.mubr.f32.mxu0 0.0
    %248 = vmatmul.mubr.f32.gmra.mxu0 %v145
    %v249 = vpop.f32.mrf.mxu0
    %v250 = vadd.f32 0.0, %v249
    %v251 = vpop.f32.mrf.mxu0
    %252 = vmatprep.mubr.f32.mxu0 0.0
    %253 = vmatmul.mubr.f32.gmra.mxu0 %v146
    %v254 = vpop.f32.mrf.mxu0
    %v255 = vadd.f32 0.0, %v254
    %v256 = vpop.f32.mrf.mxu0
    %257 = vmatprep.mubr.f32.mxu0 0.0
    %258 = vmatmul.mubr.f32.gmra.mxu0 %v147
    %v259 = vpop.f32.mrf.mxu0
    %v260 = vadd.f32 0.0, %v259
    %v261 = vpop.f32.mrf.mxu0
    %262 = vmatprep.mubr.f32.mxu0 0.0
    %263 = vmatmul.mubr.f32.gmra.mxu0 %v148
    %v264 = vpop.f32.mrf.mxu0
    %v265 = vadd.f32 0.0, %v264
    %v266 = vpop.f32.mrf.mxu0
    %267 = vmatprep.mubr.f32.mxu0 0.0
    %268 = vmatmul.mubr.f32.gmra.mxu0 %v149
    %v269 = vpop.f32.mrf.mxu0
    %v270 = vadd.f32 0.0, %v269
    %v271 = vpop.f32.mrf.mxu0
    %272 = vmatprep.mubr.f32.mxu0 0.0
    %273 = vmatmul.mubr.f32.gmra.mxu0 %v150
    %v274 = vpop.f32.mrf.mxu0
    %v275 = vadd.f32 0.0, %v274
    %v276 = vpop.f32.mrf.mxu0
    %277 = vmatprep.mubr.f32.mxu0 0.0
    %278 = vmatmul.mubr.f32.gmra.mxu0 %v151
    %v279 = vpop.f32.mrf.mxu0
    %v280 = vadd.f32 0.0, %v279
    %v281 = vpop.f32.mrf.mxu0
    %282 = vmatprep.mubr.f32.mxu0 0.0
    %283 = vmatmul.mubr.f32.gmra.mxu0 %v152
    %v284 = vpop.f32.mrf.mxu0
    %v285 = vadd.f32 0.0, %v284
    %v286 = vpop.f32.mrf.mxu0
    %287 = vmatprep.mubr.f32.mxu0 0.0
    %288 = vmatmul.mubr.f32.gmra.mxu0 %v153
    %v289 = vpop.f32.mrf.mxu0
    %v290 = vadd.f32 0.0, %v289
    %v291 = vpop.f32.mrf.mxu0
    %292 = vmatprep.mubr.f32.mxu0 0.0
    %293 = vmatmul.mubr.f32.gmra.mxu0 %v154
    %v294 = vpop.f32.mrf.mxu0
    %v295 = vadd.f32 0.0, %v294
    %v296 = vpop.f32.mrf.mxu0
    %297 = vmatprep.mubr.f32.mxu0 0.0
    %298 = vmatmul.mubr.f32.gmra.mxu0 %v155
    %v299 = vpop.f32.mrf.mxu0
    %v300 = vadd.f32 0.0, %v299
    %v301 = vpop.f32.mrf.mxu0
    %302 = vmatprep.mubr.f32.mxu0 0.0
    %303 = vmatmul.mubr.f32.gmra.mxu0 %v156
    %v304 = vpop.f32.mrf.mxu0
    %v305 = vadd.f32 0.0, %v304
    %v306 = vpop.f32.mrf.mxu0
    %307 = vmatprep.mubr.f32.mxu0 0.0
    %308 = vmatmul.mubr.f32.gmra.mxu0 %v157
    %v309 = vpop.f32.mrf.mxu0
    %v310 = vadd.f32 0.0, %v309
    %v311 = vpop.f32.mrf.mxu0
    %312 = vmatprep.mubr.f32.mxu0 0.0
    %313 = vmatmul.mubr.f32.gmra.mxu0 %v158
    %v314 = vpop.f32.mrf.mxu0
    %v315 = vadd.f32 0.0, %v314
    %v316 = vpop.f32.mrf.mxu0
    %317 = vmatprep.mubr.f32.mxu0 0.0
    %318 = vmatmul.mubr.f32.gmra.mxu0 %v159
    %v319 = vpop.f32.mrf.mxu0
    %v320 = vadd.f32 0.0, %v319
    %v321 = vpop.f32.mrf.mxu0
    %322 = vdwg.mxu0
    %v323 = vadd.f32 %v128, %v245
    %v324 = vadd.f32 %v129, %v250
    %v325 = vadd.f32 %v130, %v255
    %v326 = vadd.f32 %v131, %v260
    %v327 = vadd.f32 %v132, %v265
    %v328 = vadd.f32 %v133, %v270
    %v329 = vadd.f32 %v134, %v275
    %v330 = vadd.f32 %v135, %v280
    %v331 = vadd.f32 %v136, %v285
    %v332 = vadd.f32 %v137, %v290
    %v333 = vadd.f32 %v138, %v295
    %v334 = vadd.f32 %v139, %v300
    %v335 = vadd.f32 %v140, %v305
    %v336 = vadd.f32 %v141, %v310
    %v337 = vadd.f32 %v142, %v315
    %v338 = vadd.f32 %v143, %v320
    %339 = vst [vmem:[#allocation9] sm:$0xff] %v323
    %340 = vst [vmem:[#allocation9 + $0x8] sm:$0xff] %v324
    %341 = vst [vmem:[#allocation9 + $0x10] sm:$0xff] %v325
    %342 = vst [vmem:[#allocation9 + $0x18] sm:$0xff] %v326
    %343 = vst [vmem:[#allocation9 + $0x20] sm:$0xff] %v327
    %344 = vst [vmem:[#allocation9 + $0x28] sm:$0xff] %v328
    %345 = vst [vmem:[#allocation9 + $0x30] sm:$0xff] %v329
    %346 = vst [vmem:[#allocation9 + $0x38] sm:$0xff] %v330
    %347 = vst [vmem:[#allocation9 + $0x40] sm:$0xff] %v331
    %348 = vst [vmem:[#allocation9 + $0x48] sm:$0xff] %v332
    %349 = vst [vmem:[#allocation9 + $0x50] sm:$0xff] %v333
    %350 = vst [vmem:[#allocation9 + $0x58] sm:$0xff] %v334
    %351 = vst [vmem:[#allocation9 + $0x60] sm:$0xff] %v335
    %352 = vst [vmem:[#allocation9 + $0x68] sm:$0xff] %v336
    %353 = vst [vmem:[#allocation9 + $0x70] sm:$0xff] %v337
    %354 = vst [vmem:[#allocation9 + $0x78] sm:$0xff] %v338
    // Predicated region
    $region50: #{tpu_custom_call.1} parent=1 // pred_check
      %p355 = pneg %p72
    $region51: #{tpu_custom_call.1} parent=1 // pred_check_branch
      %357 = sbr.rel (%p355) target = $region53
    $region52: #{tpu_custom_call.1} parent=1 // pred_region
      %v358 = vld [vmem:[#allocation9] sm:$0xff]
      %v359 = vld [vmem:[#allocation9 + $0x8] sm:$0xff]
      %v360 = vld [vmem:[#allocation9 + $0x10] sm:$0xff]
      %v361 = vld [vmem:[#allocation9 + $0x18] sm:$0xff]
      %v362 = vld [vmem:[#allocation9 + $0x20] sm:$0xff]
      %v363 = vld [vmem:[#allocation9 + $0x28] sm:$0xff]
      %v364 = vld [vmem:[#allocation9 + $0x30] sm:$0xff]
      %v365 = vld [vmem:[#allocation9 + $0x38] sm:$0xff]
      %v366 = vld [vmem:[#allocation9 + $0x40] sm:$0xff]
      %v367 = vld [vmem:[#allocation9 + $0x48] sm:$0xff]
      %v368 = vld [vmem:[#allocation9 + $0x50] sm:$0xff]
      %v369 = vld [vmem:[#allocation9 + $0x58] sm:$0xff]
      %v370 = vld [vmem:[#allocation9 + $0x60] sm:$0xff]
      %v371 = vld [vmem:[#allocation9 + $0x68] sm:$0xff]
      %v372 = vld [vmem:[#allocation9 + $0x70] sm:$0xff]
      %v373 = vld [vmem:[#allocation9 + $0x78] sm:$0xff]
      %v374 = vld [vmem:[#allocation6] sm:$0xff]
      %v375 = vld [vmem:[#allocation6 + $0x8] sm:$0xff]
      %v376 = vld [vmem:[#allocation6 + $0x10] sm:$0xff]
      %v377 = vld [vmem:[#allocation6 + $0x18] sm:$0xff]
      %v378 = vld [vmem:[#allocation6 + $0x20] sm:$0xff]
      %v379 = vld [vmem:[#allocation6 + $0x28] sm:$0xff]
      %v380 = vld [vmem:[#allocation6 + $0x30] sm:$0xff]
      %v381 = vld [vmem:[#allocation6 + $0x38] sm:$0xff]
      %v382 = vld [vmem:[#allocation6 + $0x40] sm:$0xff]
      %v383 = vld [vmem:[#allocation6 + $0x48] sm:$0xff]
      %v384 = vld [vmem:[#allocation6 + $0x50] sm:$0xff]
      %v385 = vld [vmem:[#allocation6 + $0x58] sm:$0xff]
      %v386 = vld [vmem:[#allocation6 + $0x60] sm:$0xff]
      %v387 = vld [vmem:[#allocation6 + $0x68] sm:$0xff]
      %v388 = vld [vmem:[#allocation6 + $0x70] sm:$0xff]
      %v389 = vld [vmem:[#allocation6 + $0x78] sm:$0xff]
      %v390 = vld [vmem:[%s4] sm:$0x1]
      %v392 = vlaneseq
      %v393 = vshrl.u32 %v392, 7
      %v394 = vsub.s32 0, %v393
      %v395 = vrot.slane %v390, %v394
      %397 = vmatprep.subr.mxu0 0.0
      %398 = vmatpush1.msra.mxu0 %v389
      %399 = vmatprep.subr.mxu0 0.0
      %400 = vmatpush1.msra.mxu0 %v388
      %401 = vmatprep.subr.mxu0 0.0
      %402 = vmatpush1.msra.mxu0 %v387
      %403 = vmatprep.subr.mxu0 0.0
      %404 = vmatpush1.msra.mxu0 %v386
      %405 = vmatprep.subr.mxu0 0.0
      %406 = vmatpush1.msra.mxu0 %v385
      %407 = vmatprep.subr.mxu0 0.0
      %408 = vmatpush1.msra.mxu0 %v384
      %409 = vmatprep.subr.mxu0 0.0
      %410 = vmatpush1.msra.mxu0 %v383
      %411 = vmatprep.subr.mxu0 0.0
      %412 = vmatpush1.msra.mxu0 %v382
      %413 = vmatprep.subr.mxu0 0.0
      %414 = vmatpush1.msra.mxu0 %v381
      %415 = vmatprep.subr.mxu0 0.0
      %416 = vmatpush1.msra.mxu0 %v380
      %417 = vmatprep.subr.mxu0 0.0
      %418 = vmatpush1.msra.mxu0 %v379
      %419 = vmatprep.subr.mxu0 0.0
      %420 = vmatpush1.msra.mxu0 %v378
      %421 = vmatprep.subr.mxu0 0.0
      %422 = vmatpush1.msra.mxu0 %v377
      %423 = vmatprep.subr.mxu0 0.0
      %424 = vmatpush1.msra.mxu0 %v376
      %425 = vmatprep.subr.mxu0 0.0
      %426 = vmatpush1.msra.mxu0 %v375
      %427 = vmatprep.subr.mxu0 0.0
      %428 = vmatpush1.msra.mxu0 %v374
      %429 = vmatprep.subr.mxu0 0.0
      %430 = vmatpush2.msra.mxu0 0.0
      %431 = vmatprep.subr.mxu0 0.0
      %432 = vmatpush2.msra.mxu0 0.0
      %433 = vmatprep.subr.mxu0 0.0
      %434 = vmatpush2.msra.mxu0 0.0
      %435 = vmatprep.subr.mxu0 0.0
      %436 = vmatpush2.msra.mxu0 0.0
      %437 = vmatprep.subr.mxu0 0.0
      %438 = vmatpush2.msra.mxu0 0.0
      %439 = vmatprep.subr.mxu0 0.0
      %440 = vmatpush2.msra.mxu0 0.0
      %441 = vmatprep.subr.mxu0 0.0
      %442 = vmatpush2.msra.mxu0 0.0
      %443 = vmatprep.subr.mxu0 0.0
      %444 = vmatpush2.msra.mxu0 0.0
      %445 = vmatprep.subr.mxu0 0.0
      %446 = vmatpush2.msra.mxu0 0.0
      %447 = vmatprep.subr.mxu0 0.0
      %448 = vmatpush2.msra.mxu0 0.0
      %449 = vmatprep.subr.mxu0 0.0
      %450 = vmatpush2.msra.mxu0 0.0
      %451 = vmatprep.subr.mxu0 0.0
      %452 = vmatpush2.msra.mxu0 0.0
      %453 = vmatprep.subr.mxu0 0.0
      %454 = vmatpush2.msra.mxu0 0.0
      %455 = vmatprep.subr.mxu0 0.0
      %456 = vmatpush2.msra.mxu0 0.0
      %457 = vmatprep.subr.mxu0 0.0
      %458 = vmatpush2.msra.mxu0 0.0
      %459 = vmatprep.subr.mxu0 0.0
      %460 = vmatpush2.msra.mxu0 0.0
      %461 = vmatprep.mubr.f32.mxu0 0.0
      %462 = vmatmul.mubr.f32.gmra.mxu0 %v358
      %v463 = vpop.f32.mrf.mxu0
      %v464 = vadd.f32 %v395, %v463
      %v465 = vpop.f32.mrf.mxu0
      %466 = vmatprep.mubr.f32.mxu0 0.0
      %467 = vmatmul.mubr.f32.gmra.mxu0 %v359
      %v468 = vpop.f32.mrf.mxu0
      %v469 = vadd.f32 %v395, %v468
      %v470 = vpop.f32.mrf.mxu0
      %471 = vmatprep.mubr.f32.mxu0 0.0
      %472 = vmatmul.mubr.f32.gmra.mxu0 %v360
      %v473 = vpop.f32.mrf.mxu0
      %v474 = vadd.f32 %v395, %v473
      %v475 = vpop.f32.mrf.mxu0
      %476 = vmatprep.mubr.f32.mxu0 0.0
      %477 = vmatmul.mubr.f32.gmra.mxu0 %v361
      %v478 = vpop.f32.mrf.mxu0
      %v479 = vadd.f32 %v395, %v478
      %v480 = vpop.f32.mrf.mxu0
      %481 = vmatprep.mubr.f32.mxu0 0.0
      %482 = vmatmul.mubr.f32.gmra.mxu0 %v362
      %v483 = vpop.f32.mrf.mxu0
      %v484 = vadd.f32 %v395, %v483
      %v485 = vpop.f32.mrf.mxu0
      %486 = vmatprep.mubr.f32.mxu0 0.0
      %487 = vmatmul.mubr.f32.gmra.mxu0 %v363
      %v488 = vpop.f32.mrf.mxu0
      %v489 = vadd.f32 %v395, %v488
      %v490 = vpop.f32.mrf.mxu0
      %491 = vmatprep.mubr.f32.mxu0 0.0
      %492 = vmatmul.mubr.f32.gmra.mxu0 %v364
      %v493 = vpop.f32.mrf.mxu0
      %v494 = vadd.f32 %v395, %v493
      %v495 = vpop.f32.mrf.mxu0
      %496 = vmatprep.mubr.f32.mxu0 0.0
      %497 = vmatmul.mubr.f32.gmra.mxu0 %v365
      %v498 = vpop.f32.mrf.mxu0
      %v499 = vadd.f32 %v395, %v498
      %v500 = vpop.f32.mrf.mxu0
      %501 = vmatprep.mubr.f32.mxu0 0.0
      %502 = vmatmul.mubr.f32.gmra.mxu0 %v366
      %v503 = vpop.f32.mrf.mxu0
      %v504 = vadd.f32 %v395, %v503
      %v505 = vpop.f32.mrf.mxu0
      %506 = vmatprep.mubr.f32.mxu0 0.0
      %507 = vmatmul.mubr.f32.gmra.mxu0 %v367
      %v508 = vpop.f32.mrf.mxu0
      %v509 = vadd.f32 %v395, %v508
      %v510 = vpop.f32.mrf.mxu0
      %511 = vmatprep.mubr.f32.mxu0 0.0
      %512 = vmatmul.mubr.f32.gmra.mxu0 %v368
      %v513 = vpop.f32.mrf.mxu0
      %v514 = vadd.f32 %v395, %v513
      %v515 = vpop.f32.mrf.mxu0
      %516 = vmatprep.mubr.f32.mxu0 0.0
      %517 = vmatmul.mubr.f32.gmra.mxu0 %v369
      %v518 = vpop.f32.mrf.mxu0
      %v519 = vadd.f32 %v395, %v518
      %v520 = vpop.f32.mrf.mxu0
      %521 = vmatprep.mubr.f32.mxu0 0.0
      %522 = vmatmul.mubr.f32.gmra.mxu0 %v370
      %v523 = vpop.f32.mrf.mxu0
      %v524 = vadd.f32 %v395, %v523
      %v525 = vpop.f32.mrf.mxu0
      %526 = vmatprep.mubr.f32.mxu0 0.0
      %527 = vmatmul.mubr.f32.gmra.mxu0 %v371
      %v528 = vpop.f32.mrf.mxu0
      %v529 = vadd.f32 %v395, %v528
      %v530 = vpop.f32.mrf.mxu0
      %531 = vmatprep.mubr.f32.mxu0 0.0
      %532 = vmatmul.mubr.f32.gmra.mxu0 %v372
      %v533 = vpop.f32.mrf.mxu0
      %v534 = vadd.f32 %v395, %v533
      %v535 = vpop.f32.mrf.mxu0
      %536 = vmatprep.mubr.f32.mxu0 0.0
      %537 = vmatmul.mubr.f32.gmra.mxu0 %v373
      %v538 = vpop.f32.mrf.mxu0
      %v539 = vadd.f32 %v395, %v538
      %v540 = vpop.f32.mrf.mxu0
      %541 = vdwg.mxu0
      %v542 = vmax.f32 %v464, 0.0
      %v543 = vmax.f32 %v469, 0.0
      %v544 = vmax.f32 %v474, 0.0
      %v545 = vmax.f32 %v479, 0.0
      %v546 = vmax.f32 %v484, 0.0
      %v547 = vmax.f32 %v489, 0.0
      %v548 = vmax.f32 %v494, 0.0
      %v549 = vmax.f32 %v499, 0.0
      %v550 = vmax.f32 %v504, 0.0
      %v551 = vmax.f32 %v509, 0.0
      %v552 = vmax.f32 %v514, 0.0
      %v553 = vmax.f32 %v519, 0.0
      %v554 = vmax.f32 %v524, 0.0
      %v555 = vmax.f32 %v529, 0.0
      %v556 = vmax.f32 %v534, 0.0
      %v557 = vmax.f32 %v539, 0.0
      %v558 = vld [vmem:[#allocation8] sm:$0xff]
      %v559 = vld [vmem:[#allocation8 + $0x8] sm:$0xff]
      %v560 = vld [vmem:[#allocation8 + $0x10] sm:$0xff]
      %v561 = vld [vmem:[#allocation8 + $0x18] sm:$0xff]
      %v562 = vld [vmem:[#allocation8 + $0x20] sm:$0xff]
      %v563 = vld [vmem:[#allocation8 + $0x28] sm:$0xff]
      %v564 = vld [vmem:[#allocation8 + $0x30] sm:$0xff]
      %v565 = vld [vmem:[#allocation8 + $0x38] sm:$0xff]
      %v566 = vld [vmem:[#allocation8 + $0x40] sm:$0xff]
      %v567 = vld [vmem:[#allocation8 + $0x48] sm:$0xff]
      %v568 = vld [vmem:[#allocation8 + $0x50] sm:$0xff]
      %v569 = vld [vmem:[#allocation8 + $0x58] sm:$0xff]
      %v570 = vld [vmem:[#allocation8 + $0x60] sm:$0xff]
      %v571 = vld [vmem:[#allocation8 + $0x68] sm:$0xff]
      %v572 = vld [vmem:[#allocation8 + $0x70] sm:$0xff]
      %v573 = vld [vmem:[#allocation8 + $0x78] sm:$0xff]
      %574 = vmatprep.subr.mxu0 0.0
      %575 = vmatpush1.msra.mxu0 %v573
      %576 = vmatprep.subr.mxu0 0.0
      %577 = vmatpush1.msra.mxu0 %v572
      %578 = vmatprep.subr.mxu0 0.0
      %579 = vmatpush1.msra.mxu0 %v571
      %580 = vmatprep.subr.mxu0 0.0
      %581 = vmatpush1.msra.mxu0 %v570
      %582 = vmatprep.subr.mxu0 0.0
      %583 = vmatpush1.msra.mxu0 %v569
      %584 = vmatprep.subr.mxu0 0.0
      %585 = vmatpush1.msra.mxu0 %v568
      %586 = vmatprep.subr.mxu0 0.0
      %587 = vmatpush1.msra.mxu0 %v567
      %588 = vmatprep.subr.mxu0 0.0
      %589 = vmatpush1.msra.mxu0 %v566
      %590 = vmatprep.subr.mxu0 0.0
      %591 = vmatpush1.msra.mxu0 %v565
      %592 = vmatprep.subr.mxu0 0.0
      %593 = vmatpush1.msra.mxu0 %v564
      %594 = vmatprep.subr.mxu0 0.0
      %595 = vmatpush1.msra.mxu0 %v563
      %596 = vmatprep.subr.mxu0 0.0
      %597 = vmatpush1.msra.mxu0 %v562
      %598 = vmatprep.subr.mxu0 0.0
      %599 = vmatpush1.msra.mxu0 %v561
      %600 = vmatprep.subr.mxu0 0.0
      %601 = vmatpush1.msra.mxu0 %v560
      %602 = vmatprep.subr.mxu0 0.0
      %603 = vmatpush1.msra.mxu0 %v559
      %604 = vmatprep.subr.mxu0 0.0
      %605 = vmatpush1.msra.mxu0 %v558
      %606 = vmatprep.subr.mxu0 0.0
      %607 = vmatpush2.msra.mxu0 0.0
      %608 = vmatprep.subr.mxu0 0.0
      %609 = vmatpush2.msra.mxu0 0.0
      %610 = vmatprep.subr.mxu0 0.0
      %611 = vmatpush2.msra.mxu0 0.0
      %612 = vmatprep.subr.mxu0 0.0
      %613 = vmatpush2.msra.mxu0 0.0
      %614 = vmatprep.subr.mxu0 0.0
      %615 = vmatpush2.msra.mxu0 0.0
      %616 = vmatprep.subr.mxu0 0.0
      %617 = vmatpush2.msra.mxu0 0.0
      %618 = vmatprep.subr.mxu0 0.0
      %619 = vmatpush2.msra.mxu0 0.0
      %620 = vmatprep.subr.mxu0 0.0
      %621 = vmatpush2.msra.mxu0 0.0
      %622 = vmatprep.subr.mxu0 0.0
      %623 = vmatpush2.msra.mxu0 0.0
      %624 = vmatprep.subr.mxu0 0.0
      %625 = vmatpush2.msra.mxu0 0.0
      %626 = vmatprep.subr.mxu0 0.0
      %627 = vmatpush2.msra.mxu0 0.0
      %628 = vmatprep.subr.mxu0 0.0
      %629 = vmatpush2.msra.mxu0 0.0
      %630 = vmatprep.subr.mxu0 0.0
      %631 = vmatpush2.msra.mxu0 0.0
      %632 = vmatprep.subr.mxu0 0.0
      %633 = vmatpush2.msra.mxu0 0.0
      %634 = vmatprep.subr.mxu0 0.0
      %635 = vmatpush2.msra.mxu0 0.0
      %636 = vmatprep.subr.mxu0 0.0
      %637 = vmatpush2.msra.mxu0 0.0
      %638 = vmatprep.mubr.f32.mxu0 0.0
      %639 = vmatmul.mubr.f32.gmra.mxu0 %v542
      %v640 = vpop.f32.mrf.mxu0
      %v641 = vadd.f32 0.0, %v640
      %v642 = vpop.f32.mrf.mxu0
      %643 = vmatprep.mubr.f32.mxu0 0.0
      %644 = vmatmul.mubr.f32.gmra.mxu0 %v543
      %v645 = vpop.f32.mrf.mxu0
      %v646 = vadd.f32 0.0, %v645
      %v647 = vpop.f32.mrf.mxu0
      %648 = vmatprep.mubr.f32.mxu0 0.0
      %649 = vmatmul.mubr.f32.gmra.mxu0 %v544
      %v650 = vpop.f32.mrf.mxu0
      %v651 = vadd.f32 0.0, %v650
      %v652 = vpop.f32.mrf.mxu0
      %653 = vmatprep.mubr.f32.mxu0 0.0
      %654 = vmatmul.mubr.f32.gmra.mxu0 %v545
      %v655 = vpop.f32.mrf.mxu0
      %v656 = vadd.f32 0.0, %v655
      %v657 = vpop.f32.mrf.mxu0
      %658 = vmatprep.mubr.f32.mxu0 0.0
      %659 = vmatmul.mubr.f32.gmra.mxu0 %v546
      %v660 = vpop.f32.mrf.mxu0
      %v661 = vadd.f32 0.0, %v660
      %v662 = vpop.f32.mrf.mxu0
      %663 = vmatprep.mubr.f32.mxu0 0.0
      %664 = vmatmul.mubr.f32.gmra.mxu0 %v547
      %v665 = vpop.f32.mrf.mxu0
      %v666 = vadd.f32 0.0, %v665
      %v667 = vpop.f32.mrf.mxu0
      %668 = vmatprep.mubr.f32.mxu0 0.0
      %669 = vmatmul.mubr.f32.gmra.mxu0 %v548
      %v670 = vpop.f32.mrf.mxu0
      %v671 = vadd.f32 0.0, %v670
      %v672 = vpop.f32.mrf.mxu0
      %673 = vmatprep.mubr.f32.mxu0 0.0
      %674 = vmatmul.mubr.f32.gmra.mxu0 %v549
      %v675 = vpop.f32.mrf.mxu0
      %v676 = vadd.f32 0.0, %v675
      %v677 = vpop.f32.mrf.mxu0
      %678 = vmatprep.mubr.f32.mxu0 0.0
      %679 = vmatmul.mubr.f32.gmra.mxu0 %v550
      %v680 = vpop.f32.mrf.mxu0
      %v681 = vadd.f32 0.0, %v680
      %v682 = vpop.f32.mrf.mxu0
      %683 = vmatprep.mubr.f32.mxu0 0.0
      %684 = vmatmul.mubr.f32.gmra.mxu0 %v551
      %v685 = vpop.f32.mrf.mxu0
      %v686 = vadd.f32 0.0, %v685
      %v687 = vpop.f32.mrf.mxu0
      %688 = vmatprep.mubr.f32.mxu0 0.0
      %689 = vmatmul.mubr.f32.gmra.mxu0 %v552
      %v690 = vpop.f32.mrf.mxu0
      %v691 = vadd.f32 0.0, %v690
      %v692 = vpop.f32.mrf.mxu0
      %693 = vmatprep.mubr.f32.mxu0 0.0
      %694 = vmatmul.mubr.f32.gmra.mxu0 %v553
      %v695 = vpop.f32.mrf.mxu0
      %v696 = vadd.f32 0.0, %v695
      %v697 = vpop.f32.mrf.mxu0
      %698 = vmatprep.mubr.f32.mxu0 0.0
      %699 = vmatmul.mubr.f32.gmra.mxu0 %v554
      %v700 = vpop.f32.mrf.mxu0
      %v701 = vadd.f32 0.0, %v700
      %v702 = vpop.f32.mrf.mxu0
      %703 = vmatprep.mubr.f32.mxu0 0.0
      %704 = vmatmul.mubr.f32.gmra.mxu0 %v555
      %v705 = vpop.f32.mrf.mxu0
      %v706 = vadd.f32 0.0, %v705
      %v707 = vpop.f32.mrf.mxu0
      %708 = vmatprep.mubr.f32.mxu0 0.0
      %709 = vmatmul.mubr.f32.gmra.mxu0 %v556
      %v710 = vpop.f32.mrf.mxu0
      %v711 = vadd.f32 0.0, %v710
      %v712 = vpop.f32.mrf.mxu0
      %713 = vmatprep.mubr.f32.mxu0 0.0
      %714 = vmatmul.mubr.f32.gmra.mxu0 %v557
      %v715 = vpop.f32.mrf.mxu0
      %v716 = vadd.f32 0.0, %v715
      %v717 = vpop.f32.mrf.mxu0
      %718 = vdwg.mxu0
      %v719 = vld [vmem:[%s7] sm:$0xff]
      %v720 = vld [vmem:[%s7 + $0x8] sm:$0xff]
      %v721 = vld [vmem:[%s7 + $0x10] sm:$0xff]
      %v722 = vld [vmem:[%s7 + $0x18] sm:$0xff]
      %v723 = vld [vmem:[%s7 + $0x20] sm:$0xff]
      %v724 = vld [vmem:[%s7 + $0x28] sm:$0xff]
      %v725 = vld [vmem:[%s7 + $0x30] sm:$0xff]
      %v726 = vld [vmem:[%s7 + $0x38] sm:$0xff]
      %v727 = vld [vmem:[%s7 + $0x40] sm:$0xff]
      %v728 = vld [vmem:[%s7 + $0x48] sm:$0xff]
      %v729 = vld [vmem:[%s7 + $0x50] sm:$0xff]
      %v730 = vld [vmem:[%s7 + $0x58] sm:$0xff]
      %v731 = vld [vmem:[%s7 + $0x60] sm:$0xff]
      %v732 = vld [vmem:[%s7 + $0x68] sm:$0xff]
      %v733 = vld [vmem:[%s7 + $0x70] sm:$0xff]
      %v734 = vld [vmem:[%s7 + $0x78] sm:$0xff]
      %736 = vset.pattern.permute.xlu0 0
      %737 = vperm.xlu0 %736, %v719
      %v738 = vpop.permute.xlu0 %737
      %741 = vset.pattern.permute.xlu0 0
      %742 = vperm.xlu0 %741, %v720
      %v743 = vpop.permute.xlu0 %742
      %746 = vset.pattern.permute.xlu0 0
      %747 = vperm.xlu0 %746, %v721
      %v748 = vpop.permute.xlu0 %747
      %751 = vset.pattern.permute.xlu0 0
      %752 = vperm.xlu0 %751, %v722
      %v753 = vpop.permute.xlu0 %752
      %756 = vset.pattern.permute.xlu0 0
      %757 = vperm.xlu0 %756, %v723
      %v758 = vpop.permute.xlu0 %757
      %761 = vset.pattern.permute.xlu0 0
      %762 = vperm.xlu0 %761, %v724
      %v763 = vpop.permute.xlu0 %762
      %766 = vset.pattern.permute.xlu0 0
      %767 = vperm.xlu0 %766, %v725
      %v768 = vpop.permute.xlu0 %767
      %771 = vset.pattern.permute.xlu0 0
      %772 = vperm.xlu0 %771, %v726
      %v773 = vpop.permute.xlu0 %772
      %776 = vset.pattern.permute.xlu0 0
      %777 = vperm.xlu0 %776, %v727
      %v778 = vpop.permute.xlu0 %777
      %781 = vset.pattern.permute.xlu0 0
      %782 = vperm.xlu0 %781, %v728
      %v783 = vpop.permute.xlu0 %782
      %786 = vset.pattern.permute.xlu0 0
      %787 = vperm.xlu0 %786, %v729
      %v788 = vpop.permute.xlu0 %787
      %791 = vset.pattern.permute.xlu0 0
      %792 = vperm.xlu0 %791, %v730
      %v793 = vpop.permute.xlu0 %792
      %796 = vset.pattern.permute.xlu0 0
      %797 = vperm.xlu0 %796, %v731
      %v798 = vpop.permute.xlu0 %797
      %801 = vset.pattern.permute.xlu0 0
      %802 = vperm.xlu0 %801, %v732
      %v803 = vpop.permute.xlu0 %802
      %806 = vset.pattern.permute.xlu0 0
      %807 = vperm.xlu0 %806, %v733
      %v808 = vpop.permute.xlu0 %807
      %811 = vset.pattern.permute.xlu0 0
      %812 = vperm.xlu0 %811, %v734
      %v813 = vpop.permute.xlu0 %812
      %v815 = vmul.f32 %v641, %v738
      %v816 = vmul.f32 %v646, %v743
      %v817 = vmul.f32 %v651, %v748
      %v818 = vmul.f32 %v656, %v753
      %v819 = vmul.f32 %v661, %v758
      %v820 = vmul.f32 %v666, %v763
      %v821 = vmul.f32 %v671, %v768
      %v822 = vmul.f32 %v676, %v773
      %v823 = vmul.f32 %v681, %v778
      %v824 = vmul.f32 %v686, %v783
      %v825 = vmul.f32 %v691, %v788
      %v826 = vmul.f32 %v696, %v793
      %v827 = vmul.f32 %v701, %v798
      %v828 = vmul.f32 %v706, %v803
      %v829 = vmul.f32 %v711, %v808
      %v830 = vmul.f32 %v716, %v813
      %v831 = vld [vmem:[%s6] sm:$0x1]
      %v833 = vlaneseq
      %v834 = vshrl.u32 %v833, 7
      %v835 = vsub.s32 0, %v834
      %v836 = vrot.slane %v831, %v835
      %v838 = vadd.f32 %v815, %v836
      %v839 = vadd.f32 %v816, %v836
      %v840 = vadd.f32 %v817, %v836
      %v841 = vadd.f32 %v818, %v836
      %v842 = vadd.f32 %v819, %v836
      %v843 = vadd.f32 %v820, %v836
      %v844 = vadd.f32 %v821, %v836
      %v845 = vadd.f32 %v822, %v836
      %v846 = vadd.f32 %v823, %v836
      %v847 = vadd.f32 %v824, %v836
      %v848 = vadd.f32 %v825, %v836
      %v849 = vadd.f32 %v826, %v836
      %v850 = vadd.f32 %v827, %v836
      %v851 = vadd.f32 %v828, %v836
      %v852 = vadd.f32 %v829, %v836
      %v853 = vadd.f32 %v830, %v836
      %v854 = vmax.f32 %v838, 0.0
      %v855 = vmax.f32 %v839, 0.0
      %v856 = vmax.f32 %v840, 0.0
      %v857 = vmax.f32 %v841, 0.0
      %v858 = vmax.f32 %v842, 0.0
      %v859 = vmax.f32 %v843, 0.0
      %v860 = vmax.f32 %v844, 0.0
      %v861 = vmax.f32 %v845, 0.0
      %v862 = vmax.f32 %v846, 0.0
      %v863 = vmax.f32 %v847, 0.0
      %v864 = vmax.f32 %v848, 0.0
      %v865 = vmax.f32 %v849, 0.0
      %v866 = vmax.f32 %v850, 0.0
      %v867 = vmax.f32 %v851, 0.0
      %v868 = vmax.f32 %v852, 0.0
      %v869 = vmax.f32 %v853, 0.0
      %s870 = smul.u32 0, 128
      %s871 = scalar_lea.vmem [#allocation3], %s870
      %v872 = vld [vmem:[%s871] sm:$0xff]
      %v873 = vld [vmem:[%s871 + $0x8] sm:$0xff]
      %v874 = vld [vmem:[%s871 + $0x10] sm:$0xff]
      %v875 = vld [vmem:[%s871 + $0x18] sm:$0xff]
      %v876 = vld [vmem:[%s871 + $0x20] sm:$0xff]
      %v877 = vld [vmem:[%s871 + $0x28] sm:$0xff]
      %v878 = vld [vmem:[%s871 + $0x30] sm:$0xff]
      %v879 = vld [vmem:[%s871 + $0x38] sm:$0xff]
      %v880 = vld [vmem:[%s871 + $0x40] sm:$0xff]
      %v881 = vld [vmem:[%s871 + $0x48] sm:$0xff]
      %v882 = vld [vmem:[%s871 + $0x50] sm:$0xff]
      %v883 = vld [vmem:[%s871 + $0x58] sm:$0xff]
      %v884 = vld [vmem:[%s871 + $0x60] sm:$0xff]
      %v885 = vld [vmem:[%s871 + $0x68] sm:$0xff]
      %v886 = vld [vmem:[%s871 + $0x70] sm:$0xff]
      %v887 = vld [vmem:[%s871 + $0x78] sm:$0xff]
      %v888 = vadd.f32 %v854, %v872
      %v889 = vadd.f32 %v855, %v873
      %v890 = vadd.f32 %v856, %v874
      %v891 = vadd.f32 %v857, %v875
      %v892 = vadd.f32 %v858, %v876
      %v893 = vadd.f32 %v859, %v877
      %v894 = vadd.f32 %v860, %v878
      %v895 = vadd.f32 %v861, %v879
      %v896 = vadd.f32 %v862, %v880
      %v897 = vadd.f32 %v863, %v881
      %v898 = vadd.f32 %v864, %v882
      %v899 = vadd.f32 %v865, %v883
      %v900 = vadd.f32 %v866, %v884
      %v901 = vadd.f32 %v867, %v885
      %v902 = vadd.f32 %v868, %v886
      %v903 = vadd.f32 %v869, %v887
      %904 = vst [vmem:[#allocation9] sm:$0xff] %v888
      %905 = vst [vmem:[#allocation9 + $0x8] sm:$0xff] %v889
      %906 = vst [vmem:[#allocation9 + $0x10] sm:$0xff] %v890
      %907 = vst [vmem:[#allocation9 + $0x18] sm:$0xff] %v891
      %908 = vst [vmem:[#allocation9 + $0x20] sm:$0xff] %v892
      %909 = vst [vmem:[#allocation9 + $0x28] sm:$0xff] %v893
      %910 = vst [vmem:[#allocation9 + $0x30] sm:$0xff] %v894
      %911 = vst [vmem:[#allocation9 + $0x38] sm:$0xff] %v895
      %912 = vst [vmem:[#allocation9 + $0x40] sm:$0xff] %v896
      %913 = vst [vmem:[#allocation9 + $0x48] sm:$0xff] %v897
      %914 = vst [vmem:[#allocation9 + $0x50] sm:$0xff] %v898
      %915 = vst [vmem:[#allocation9 + $0x58] sm:$0xff] %v899
      %916 = vst [vmem:[#allocation9 + $0x60] sm:$0xff] %v900
      %917 = vst [vmem:[#allocation9 + $0x68] sm:$0xff] %v901
      %918 = vst [vmem:[#allocation9 + $0x70] sm:$0xff] %v902
      %919 = vst [vmem:[#allocation9 + $0x78] sm:$0xff] %v903
    $region53: #{tpu_custom_call.1} parent=1 // pred_fallthru
      _
    // Predicated region
    $region54: #{tpu_custom_call.1} parent=1 // pred_check
      _
    $region55: #{tpu_custom_call.1} parent=1 // pred_check_branch
      %921 = sbr.rel (0) target = $region57
    $region56: #{tpu_custom_call.1} parent=1 // pred_region
      %s923 = ssub.s32 2048, 2048
      %924 = vsyncadd [#allocation5], %s923
      %s925 = sshll.u32 [#allocation9], 4
      %s926 = int_to_ptr.vmem [resolvable:$true] %s925
      %931 = dma.vmem_to_hbm [thread:$0]  %s926, 2048, %s8, [#allocation5], 128, 128, 8
    $region57: #{tpu_custom_call.1} parent=1 // pred_fallthru
      _
    // Predicated region
    $region58: #{tpu_custom_call.1} parent=1 // pred_check
      _
    $region59: #{tpu_custom_call.1} parent=1 // pred_check_branch
      %933 = sbr.rel (0) target = $region61
    $region60: #{tpu_custom_call.1} parent=1 // pred_region
      %934 = dma.done [#allocation5], 2048
    $region61: #{tpu_custom_call.1} parent=1 // pred_fallthru
      _
    %935 = vsyncpa [#allocation4], 1
    %936 = vsyncpa [#allocation7], 1
    %937 = vsyncpa [#allocation5], 1

</llo_original>
